<compile_context>
chip_gen: v7x
topology: tpu7x:2x2x1
jax: 0.10.0
libtpu: 0.0.40
codegen_flags: <defaults>
</compile_context>

<pallas_src>
import functools

import jax
import jax.numpy as jnp
from jax.experimental import pallas as pl
from jax.experimental.pallas import tpu as pltpu

NUM_CLASSES = 45


def _round_up(v, m):
    return ((v + m - 1) // m) * m


# ----------------------------------------------------------------------------
# Pallas kernels
# ----------------------------------------------------------------------------

def _gemm_nk1_kernel(x_ref, w_ref, b_ref, *rest, relu, has_residual):
    """Single-K-step GEMM: o = maybe_relu(x @ w + bias [+ residual]).

    No f32 VMEM scratch round trip -- everything happens in one grid step.
    """
    if has_residual:
        r_ref, o_ref = rest
    else:
        (o_ref,) = rest
    y = jnp.dot(x_ref[...], w_ref[...], preferred_element_type=jnp.float32)
    y = y + b_ref[...]
    if has_residual:
        y = y + r_ref[...].astype(jnp.float32)
    if relu:
        y = jnp.maximum(y, 0.0)
    o_ref[...] = y.astype(o_ref.dtype)


def _gemm_nkn_kernel(x_ref, w_ref, b_ref, *rest, relu, has_residual):
    """Multi-K-step GEMM with f32 VMEM accumulator (K is the last grid axis).

    The accumulator is initialised with the bias at k == 0 (drops the epilogue
    add); residual / ReLU are fused into the final-k store.
    """
    if has_residual:
        r_ref, o_ref, acc_ref = rest
    else:
        o_ref, acc_ref = rest
    k = pl.program_id(2)

    @pl.when(k == 0)
    def _():
        acc_ref[...] = jnp.broadcast_to(b_ref[...], acc_ref.shape)

    acc_ref[...] += jnp.dot(x_ref[...], w_ref[...],
                            preferred_element_type=jnp.float32)

    @pl.when(k == pl.num_programs(2) - 1)
    def _():
        y = acc_ref[...]
        if has_residual:
            y = y + r_ref[...].astype(jnp.float32)
        if relu:
            y = jnp.maximum(y, 0.0)
        o_ref[...] = y.astype(o_ref.dtype)


def _conv3x3_s1_kernel(x_ref, w_ref, b_ref, o_ref, *, mprime, wp, relu):
    """Implicit-GEMM 3x3 / stride-1 / pad-1 conv for one image.

    x_ref: (flat, Cin) -- spatially padded activation flattened over (H, W).
    For tap (di, dj) the contribution to every output position is a single
    contiguous slice of the flat axis (offset di*wp + dj), so no im2col patch
    tensor is ever materialised in HBM.  Output rows whose column lands in the
    right padding are junk and are sliced away by the wrapper.
    """
    cout = w_ref.shape[-1]
    acc = jnp.broadcast_to(b_ref[...], (mprime, cout)).astype(jnp.float32)
    for t in range(9):
        di, dj = t // 3, t % 3
        off = di * wp + dj
        xs = x_ref[pl.ds(off, mprime), :]
        acc = acc + jnp.dot(xs, w_ref[t], preferred_element_type=jnp.float32)
    if relu:
        acc = jnp.maximum(acc, 0.0)
    o_ref[...] = acc.astype(o_ref.dtype)


def _pool_fc_kernel(x_ref, w_ref, b_ref, o_ref, *, inv_hw):
    """Fused global average pool + Linear head (Dropout is identity in eval)."""
    pooled = jnp.sum(x_ref[...].astype(jnp.float32), axis=1) * inv_hw
    y = jnp.dot(pooled.astype(jnp.bfloat16), w_ref[...],
                preferred_element_type=jnp.float32)
    o_ref[...] = y + b_ref[...]


# ----------------------------------------------------------------------------
# Wrappers around pallas_call
# ----------------------------------------------------------------------------

def fused_gemm(x, w, bias, residual=None, *, relu, out_dtype=jnp.bfloat16):
    """y[m,n] = maybe_relu( sum_k x[m,k] w[k,n] + bias[n] (+ residual[m,n]) )."""
    M, K = x.shape
    K2, N = w.shape
    assert K == K2
    has_res = residual is not None

    # Tiles: tm == M where possible (no M pad / output slice), wide lane-dense
    # N tiles (tn = N/2 for N = 2048 keeps >= 2 parallel j-steps on v7x), and
    # full-K single grid step whenever K <= 2048 (skips the f32 accumulator).
    tm = min(1024, _round_up(M, 8))
    Mp = _round_up(M, tm)
    Np = _round_up(N, 128)
    if Np <= 512:
        tn = Np
    elif Np <= 1024:
        tn = 512
    else:
        tn = 1024
    Kp0 = _round_up(K, 128)
    if Kp0 <= 2048:
        tk, nk = Kp0, 1
    else:
        nk = -(-Kp0 // 2048)
        tk = _round_up(-(-Kp0 // nk), 128)
    Kp = tk * nk

    xb = x.astype(jnp.bfloat16)
    wb = w.astype(jnp.bfloat16)
    if (Mp != M) or (Kp != K):
        xb = jnp.pad(xb, ((0, Mp - M), (0, Kp - K)))
    if (Kp != K) or (Np != N):
        wb = jnp.pad(wb, ((0, Kp - K), (0, Np - N)))
    bb = bias.reshape(1, -1).astype(jnp.float32)
    if Np != N:
        bb = jnp.pad(bb, ((0, 0), (0, Np - N)))

    in_specs = [
        pl.BlockSpec((tm, tk), lambda i, j, k: (i, k)),
        pl.BlockSpec((tk, tn), lambda i, j, k: (k, j)),
        pl.BlockSpec((1, tn), lambda i, j, k: (0, j)),
    ]
    operands = [xb, wb, bb]
    if has_res:
        rb = residual.astype(jnp.bfloat16)
        if (Mp != M) or (Np != N):
            rb = jnp.pad(rb, ((0, Mp - M), (0, Np - N)))
        in_specs.append(pl.BlockSpec((tm, tn), lambda i, j, k: (i, j)))
        operands.append(rb)

    if nk == 1:
        kernel = functools.partial(_gemm_nk1_kernel, relu=relu,
                                   has_residual=has_res)
        scratch = []
    else:
        kernel = functools.partial(_gemm_nkn_kernel, relu=relu,
                                   has_residual=has_res)
        scratch = [pltpu.VMEM((tm, tn), jnp.float32)]

    out = pl.pallas_call(
        kernel,
        out_shape=jax.ShapeDtypeStruct((Mp, Np), out_dtype),
        grid_spec=pltpu.PrefetchScalarGridSpec(
            num_scalar_prefetch=0,
            grid=(Mp // tm, Np // tn, nk),
            in_specs=in_specs,
            out_specs=pl.BlockSpec((tm, tn), lambda i, j, k: (i, j)),
            scratch_shapes=scratch,
        ),
        compiler_params=pltpu.CompilerParams(
            dimension_semantics=("parallel", "parallel", "arbitrary"),
            vmem_limit_bytes=32 * 1024 * 1024),
    )(*operands)
    if (Mp != M) or (Np != N):
        out = out[:M, :N]
    return out


def conv3x3_s1(x, w, bias, *, relu):
    """3x3 / stride-1 / pad-1 conv with folded BN, via implicit GEMM."""
    N, H, W, Cin = x.shape
    Cout = w.shape[-1]
    Wp = W + 2
    # H padded by (1, 2): the extra bottom row keeps the last junk-row taps in
    # bounds so every tap is one contiguous slice of the flat axis.
    xp = jnp.pad(x.astype(jnp.bfloat16), ((0, 0), (1, 2), (1, 1), (0, 0)))
    flat = (H + 3) * Wp
    xf = xp.reshape(N, flat, Cin)
    w2 = w.reshape(9, Cin, Cout).astype(jnp.bfloat16)
    b2 = bias.reshape(1, Cout).astype(jnp.float32)
    mprime = H * Wp                       # valid rows + junk right-pad columns

    out = pl.pallas_call(
        functools.partial(_conv3x3_s1_kernel, mprime=mprime, wp=Wp, relu=relu),
        out_shape=jax.ShapeDtypeStruct((N, mprime, Cout), jnp.bfloat16),
        grid_spec=pltpu.PrefetchScalarGridSpec(
            num_scalar_prefetch=0,
            grid=(N,),
            in_specs=[
                pl.BlockSpec((None, flat, Cin), lambda n: (n, 0, 0)),
                pl.BlockSpec((9, Cin, Cout), lambda n: (0, 0, 0)),
                pl.BlockSpec((1, Cout), lambda n: (0, 0)),
            ],
            out_specs=pl.BlockSpec((None, mprime, Cout), lambda n: (n, 0, 0)),
        ),
        compiler_params=pltpu.CompilerParams(
            dimension_semantics=("parallel",),
            vmem_limit_bytes=32 * 1024 * 1024),
    )(xf, w2, b2)
    return out.reshape(N, H, Wp, Cout)[:, :, :W, :]


def conv2d_bn(x, w, bias, *, stride, padding, relu, residual=None):
    """x: (N,H,W,Cin) NHWC bf16; w: (kh,kw,Cin,Cout) with BN scale folded in.

    Fused conv + BN-bias (+ residual) (+ ReLU), output bf16 NHWC.
    """
    N, H, W, Cin = x.shape
    kh, kw, wc_in, Cout = w.shape
    assert wc_in == Cin
    if kh == 1 and kw == 1:
        xs = x if stride == 1 else x[:, ::stride, ::stride, :]
        Ho, Wo = xs.shape[1], xs.shape[2]
        x2 = xs.reshape(N * Ho * Wo, Cin)
        w2 = w.reshape(Cin, Cout)
        r2 = None if residual is None else residual.reshape(N * Ho * Wo, Cout)
        y = fused_gemm(x2, w2, bias, r2, relu=relu)
        return y.reshape(N, Ho, Wo, Cout)
    if (kh == 3 and stride == 1 and padding == 1 and residual is None
            and Cin % 128 == 0):
        return conv3x3_s1(x, w, bias, relu=relu)
    # Fallback (7x7 stem, stride-2 3x3 at stage transitions): bf16 im2col.
    # TODO(synk): extend the implicit-GEMM path to strided convs so the stem
    # and stage-transition 3x3 convs also avoid patch materialisation.
    Ho = (H + 2 * padding - kh) // stride + 1
    Wo = (W + 2 * padding - kw) // stride + 1
    xp = jnp.pad(x.astype(jnp.bfloat16),
                 ((0, 0), (padding, padding), (padding, padding), (0, 0)))
    patches = [xp[:, di:di + stride * Ho:stride, dj:dj + stride * Wo:stride, :]
               for di in range(kh) for dj in range(kw)]
    x2 = jnp.concatenate(patches, axis=-1).reshape(N * Ho * Wo, kh * kw * Cin)
    w2 = w.reshape(kh * kw * Cin, Cout)
    r2 = None if residual is None else residual.reshape(N * Ho * Wo, Cout)
    y = fused_gemm(x2, w2, bias, r2, relu=relu)
    return y.reshape(N, Ho, Wo, Cout)


def maxpool3x3_s2(x):
    """3x3 / stride-2 / pad-1 max pool as an XLA-fused jnp.maximum tree
    (single read of the padded activation, no 9x stacked tensor in HBM)."""
    N, H, W, C = x.shape
    Ho = (H + 2 - 3) // 2 + 1
    Wo = (W + 2 - 3) // 2 + 1
    xp = jnp.pad(x, ((0, 0), (1, 1), (1, 1), (0, 0)),
                 constant_values=-jnp.inf)
    out = None
    for di in range(3):
        for dj in range(3):
            tap = xp[:, di:di + 2 * Ho:2, dj:dj + 2 * Wo:2, :]
            out = tap if out is None else jnp.maximum(out, tap)
    return out


def pool_fc(x, fc_w, fc_b):
    """Global average pool + Linear(2048, 45) fused into one Pallas call."""
    N, H, W, C = x.shape
    x3 = x.reshape(N, H * W, C).astype(jnp.bfloat16)
    return pl.pallas_call(
        functools.partial(_pool_fc_kernel, inv_hw=1.0 / (H * W)),
        out_shape=jax.ShapeDtypeStruct((N, fc_w.shape[1]), jnp.float32),
    )(x3, fc_w.astype(jnp.bfloat16), fc_b.reshape(1, -1).astype(jnp.float32))


# ----------------------------------------------------------------------------
# Deterministic parameter construction (synthetic; no checkpoint load)
# ----------------------------------------------------------------------------

def make_conv_bn(key, kh, kw, cin, cout):
    k1, k2, k3 = jax.random.split(key, 3)
    fan_in = kh * kw * cin
    w = jax.random.normal(k1, (kh, kw, cin, cout), jnp.float32) * jnp.sqrt(
        2.0 / fan_in)
    gamma = 1.0 + 0.1 * jax.random.normal(k2, (cout,), jnp.float32)
    beta = 0.1 * jax.random.normal(k3, (cout,), jnp.float32)
    running_mean = jnp.zeros((cout,), jnp.float32)
    running_var = jnp.ones((cout,), jnp.float32)
    eps = 1e-5
    scale = gamma / jnp.sqrt(running_var + eps)      # eval-mode BN
    bias = beta - running_mean * scale
    w = w * scale                                    # fold BN scale into W
    # Pad channels once, to multiples of 128, so activations never need to be
    # padded or sliced between layers (zero weights/bias -> identical math).
    cin_p = cin if cin == 3 else _round_up(cin, 128)
    cout_p = _round_up(cout, 128)
    w = jnp.pad(w, ((0, 0), (0, 0), (0, cin_p - cin), (0, cout_p - cout)))
    bias = jnp.pad(bias, ((0, cout_p - cout),))
    return (w.astype(jnp.bfloat16), bias.astype(jnp.float32))


def build_resnet50_params(key):
    keys = iter(jax.random.split(key, 256))
    params = {"conv1": make_conv_bn(next(keys), 7, 7, 3, 64)}
    layer_cfg = [(3, 64, 256), (4, 128, 512), (6, 256, 1024), (3, 512, 2048)]
    in_ch = 64
    stages = []
    for nblocks, mid, out in layer_cfg:
        blocks = []
        for b in range(nblocks):
            blk = {
                "conv1": make_conv_bn(next(keys), 1, 1, in_ch, mid),
                "conv2": make_conv_bn(next(keys), 3, 3, mid, mid),
                "conv3": make_conv_bn(next(keys), 1, 1, mid, out),
            }
            if b == 0:
                blk["down"] = make_conv_bn(next(keys), 1, 1, in_ch, out)
            blocks.append(blk)
            in_ch = out
        stages.append(blocks)
    params["stages"] = stages
    kfc_w, kfc_b = jax.random.split(next(keys))
    fc_w = jax.random.normal(kfc_w, (2048, NUM_CLASSES), jnp.float32) * 0.02
    fc_b = 0.01 * jax.random.normal(kfc_b, (NUM_CLASSES,), jnp.float32)
    params["fc_w"] = jnp.pad(
        fc_w, ((0, 0), (0, 128 - NUM_CLASSES))).astype(jnp.bfloat16)
    params["fc_b"] = jnp.pad(
        fc_b, ((0, 128 - NUM_CLASSES),)).astype(jnp.float32)
    return params


# ----------------------------------------------------------------------------
# Forward pass (torchvision ResNet-50 v1.5: stride on the 3x3 conv)
# ----------------------------------------------------------------------------

@jax.jit
def stem(x_nchw, conv1_w, conv1_b):
    x = jnp.transpose(x_nchw, (0, 2, 3, 1)).astype(jnp.bfloat16)  # NCHW->NHWC
    x = conv2d_bn(x, conv1_w, conv1_b, stride=2, padding=3, relu=True)
    return maxpool3x3_s2(x)


@functools.partial(jax.jit, static_argnames=("stride",))
def bottleneck(x, blk, stride):
    w1, b1 = blk["conv1"]
    y = conv2d_bn(x, w1, b1, stride=1, padding=0, relu=True)
    w2, b2 = blk["conv2"]
    y = conv2d_bn(y, w2, b2, stride=stride, padding=1, relu=True)
    if "down" in blk:
        wd, bd = blk["down"]
        identity = conv2d_bn(x, wd, bd, stride=stride, padding=0, relu=False)
    else:
        identity = x
    w3, b3 = blk["conv3"]
    # Residual add + ReLU fused into the conv3 GEMM epilogue.
    return conv2d_bn(y, w3, b3, stride=1, padding=0, relu=True,
                     residual=identity)


@jax.jit
def head(x, fc_w, fc_b):
    # nn.Dropout(p=0.5) is identity in eval mode (the module calls .eval()).
    logits = pool_fc(x, fc_w, fc_b)
    return logits[:, :NUM_CLASSES]


def upload_model_forward(params, x_nchw):
    """Equivalent of UploadModel.forward(x): resnet50 backbone -> 45 logits."""
    w1, b1 = params["conv1"]
    x = stem(x_nchw, w1, b1)
    for si, blocks in enumerate(params["stages"]):
        for bi, blk in enumerate(blocks):
            s = 2 if (si > 0 and bi == 0) else 1
            x = bottleneck(x, blk, stride=s)
    return head(x, params["fc_w"], params["fc_b"])


# ----------------------------------------------------------------------------

if __name__ == "__main__":
    key = jax.random.PRNGKey(0)
    pkey, xkey = jax.random.split(key)
    params = build_resnet50_params(pkey)
    # Small RGB image batch consistent with the module's forward (NCHW).
    x = jax.random.normal(xkey, (2, 3, 64, 64), jnp.float32)
    logits = upload_model_forward(params, x)
    logits = jax.block_until_ready(logits)
    assert logits.shape == (2, 45), logits.shape
    assert bool(jnp.all(jnp.isfinite(logits)))
    print("KERNEL_OK")
</pallas_src>

<mosaic_0001>
module attributes {stable_mosaic.version = 11 : i64} {
  func.func @_gemm_nk1_kernel(%arg0: i32, %arg1: i32, %arg2: i32, %arg3: memref<1024x256xbf16, #tpu.memory_space<vmem>>, %arg4: memref<256x128xbf16, #tpu.memory_space<vmem>>, %arg5: memref<1x128xf32, #tpu.memory_space<vmem>>, %arg6: memref<1024x128xbf16, #tpu.memory_space<vmem>>) attributes {dimension_semantics = [#tpu.dimension_semantics<parallel>, #tpu.dimension_semantics<parallel>, #tpu.dimension_semantics<arbitrary>], iteration_bounds = array<i64: 2, 1, 1>, scalar_prefetch = 0 : i64, scratch_operands = 0 : i64, tpu.core_type = #tpu.core_type<tc>, window_params = [{transform_indices = @transform_0, window_bounds = array<i64: 1024, 256>}, {transform_indices = @transform_1, window_bounds = array<i64: 256, 128>}, {transform_indices = @transform_2, window_bounds = array<i64: 1, 128>}, {transform_indices = @transform_3, window_bounds = array<i64: 1024, 128>}]} {
    %c0 = arith.constant 0 : index
    %c0_0 = arith.constant 0 : index
    %0 = vector.load %arg3[%c0, %c0_0] : memref<1024x256xbf16, #tpu.memory_space<vmem>>, vector<1024x256xbf16>
    %c0_1 = arith.constant 0 : index
    %c0_2 = arith.constant 0 : index
    %1 = vector.load %arg4[%c0_1, %c0_2] : memref<256x128xbf16, #tpu.memory_space<vmem>>, vector<256x128xbf16>
    %cst = arith.constant dense<0.000000e+00> : vector<1024x128xf32>
    %2 = tpu.matmul %0, %1, %cst {dimension_numbers = #tpu.dot_dimension_numbers<[1], [0], [0], [1], [0, 0, 1, 1], [], []>} : vector<1024x256xbf16>, vector<256x128xbf16>, vector<1024x128xf32> -> vector<1024x128xf32>
    %c0_3 = arith.constant 0 : index
    %c0_4 = arith.constant 0 : index
    %3 = vector.load %arg5[%c0_3, %c0_4] : memref<1x128xf32, #tpu.memory_space<vmem>>, vector<1x128xf32>
    %4 = vector.broadcast %3 : vector<1x128xf32> to vector<1024x128xf32>
    %5 = arith.addf %2, %4 : vector<1024x128xf32>
    %cst_5 = arith.constant 0.000000e+00 : f32
    %6 = vector.broadcast %cst_5 : f32 to vector<1024x128xf32>
    %7 = arith.maximumf %5, %6 : vector<1024x128xf32>
    %8 = arith.truncf %7 : vector<1024x128xf32> to vector<1024x128xbf16>
    %c0_6 = arith.constant 0 : index
    %c0_7 = arith.constant 0 : index
    %9 = vector.load %arg6[%c0_6, %c0_7] : memref<1024x128xbf16, #tpu.memory_space<vmem>>, vector<1024x128xbf16>
    tpu.vector_store %arg6[%c0_6, %c0_7], %8 {strides = array<i32>} : memref<1024x128xbf16, #tpu.memory_space<vmem>>, vector<1024x128xbf16>,
    return
  }
  func.func @transform_0(%arg0: i32, %arg1: i32, %arg2: i32) -> (i32, i32) {
    %c0_i32 = arith.constant 0 : i32
    return %arg0, %arg2 : i32, i32
  }
  func.func @transform_1(%arg0: i32, %arg1: i32, %arg2: i32) -> (i32, i32) {
    %c0_i32 = arith.constant 0 : i32
    return %arg2, %arg1 : i32, i32
  }
  func.func @transform_2(%arg0: i32, %arg1: i32, %arg2: i32) -> (i32, i32) {
    %c0_i32 = arith.constant 0 : i32
    %c0_i32_0 = arith.constant 0 : i32
    return %c0_i32, %arg1 : i32, i32
  }
  func.func @transform_3(%arg0: i32, %arg1: i32, %arg2: i32) -> (i32, i32) {
    %c0_i32 = arith.constant 0 : i32
    return %arg0, %arg1 : i32, i32
  }
}

</mosaic_0001>

<llo_original>
// kernel: stem.1
$region0: #{stem.1}
  #allocation0 [shape = 'u32[]', space=smem, size = 0x4, offset = 0x4, fixed_abs, tag = 'smem constant byte address 0x4 - core index']
  #allocation1 [shape = 'u32[144,128]{1,0:T(1,128)}', space=vmem, size = 0x12000, scoped, tag = 'internal scratch']
  %s0 = inlined_call_operand.vmem [shape: bf16[2048,256], index: 0, kind: input, shape index: {}]
  %s1 = inlined_call_operand.vmem [shape: bf16[256,128], index: 1, kind: input, shape index: {}]
  %s2 = inlined_call_operand.vmem [shape: f32[1,128], index: 2, kind: input, shape index: {}]
  %s3 = inlined_call_operand.vmem [shape: bf16[2048,128], index: 3, kind: output, shape index: {}]
  %s4 = sld [smem:[#allocation0]]
  $region45: #{stem.1} parent=0
    _
  %s6 = ssub.s32 1, %s4
  %s7 = scalar_select 0, %s6, %s4
  loop: start=0, step=1, limit=4
  $region2: #{stem.1} parent=0 // loop_pre_header
    _
  $region3: #{stem.1} parent=0 // loop_header
    %s9 = sphi 0, %s13
    %p10 = scmp.ge.s32.totalorder %s9, 4
    %s16 = sphi 0, %s35
    %s17 = sphi 0, %s31
    %s18 = sphi 0, %s27
    %s19 = sphi 0, %s16
    %s20 = sphi 0, %s17
    %s21 = sphi 0, %s18
    %s22 = sphi 0, %s19
    %s23 = sphi 0, %s20
    %s24 = sphi 0, %s21
    %s40 = sphi 0, %s42
    %s43 = sphi 0, %s40
    %s44 = sphi 0, %s43
    %s60 = sphi 0, %s44
    %s68 = sphi 0, %s70
    %s71 = sphi 0, %s68
    %s72 = sphi 0, %s71
    %s88 = sphi 0, %s72
    %s94 = sphi 0, %s96
    %s97 = sphi 0, %s94
    %s98 = sphi 0, %s97
    %s114 = sphi 0, %s98
    %s122 = sphi 0, %s124
    %s125 = sphi 0, %s122
    %s126 = sphi 0, %s125
    %s142 = sphi 0, %s126
  $region4: #{stem.1} parent=0 // loop_header_branch
    %12 = sbr.rel (%p10) target = $region8
  $region5: #{stem.1} parent=0 // loop_body
    %s14 = ssub.s32 %s9, 1
    %s15 = ssub.s32 %s9, 2
    %s25 = sadd.s32 1, %s18
    %p26 = scmp.ge.s32.totalorder %s25, 1
    %s27 = scalar_select %p26, 0, %s25
    %s28 = sadd.s32 1, %s17
    %s29 = scalar_select %p26, %s28, %s17
    %p30 = scmp.ge.s32.totalorder %s29, 1
    %s31 = scalar_select %p30, 0, %s29
    %s32 = sadd.s32 1, %s16
    %s33 = scalar_select %p30, %s32, %s16
    %p34 = scmp.ge.s32.totalorder %s33, 2
    %s35 = scalar_select %p34, 0, %s33
    %s36 = ssub.s32 %s16, %s35
    %s37 = ssub.s32 %s18, %s27
    %s38 = sor.u32 %s36, %s37
    %p39 = scmp.eq.s32.totalorder %s38, 0
    %s41 = sadd.s32 %s40, 1
    %s42 = scalar_select %p39, %s40, %s41
    %p45 = pneg %p39
    %p46 = scmp.eq.s32.totalorder %s9, 1
    %p47 = por %p45, %p46
    %p48 = scmp.ne.s32.totalorder %s40, %s43
    %p49 = scmp.eq.s32.totalorder %s9, 0
    %p50 = por %p48, %p49
    %p51 = scmp.ne.s32.totalorder %s40, %s43
    %p52 = scmp.eq.s32.totalorder %s14, 1
    %p53 = por %p51, %p52
    %p54 = scmp.ne.s32.totalorder %s43, %s44
    %p55 = scmp.eq.s32.totalorder %s14, 0
    %p56 = por %p54, %p55
    %p57 = scmp.ne.s32.totalorder %s43, %s44
    %p58 = scmp.eq.s32.totalorder %s15, 1
    %p59 = por %p57, %p58
    %p61 = scmp.ne.s32.totalorder %s44, %s60
    %p62 = scmp.eq.s32.totalorder %s15, 0
    %p63 = por %p61, %p62
    %s64 = ssub.s32 %s18, %s27
    %s65 = ssub.s32 %s17, %s31
    %s66 = sor.u32 %s64, %s65
    %p67 = scmp.eq.s32.totalorder %s66, 0
    %s69 = sadd.s32 %s68, 1
    %s70 = scalar_select %p67, %s68, %s69
    %p73 = pneg %p67
    %p74 = scmp.eq.s32.totalorder %s9, 1
    %p75 = por %p73, %p74
    %p76 = scmp.ne.s32.totalorder %s68, %s71
    %p77 = scmp.eq.s32.totalorder %s9, 0
    %p78 = por %p76, %p77
    %p79 = scmp.ne.s32.totalorder %s68, %s71
    %p80 = scmp.eq.s32.totalorder %s14, 1
    %p81 = por %p79, %p80
    %p82 = scmp.ne.s32.totalorder %s71, %s72
    %p83 = scmp.eq.s32.totalorder %s14, 0
    %p84 = por %p82, %p83
    %p85 = scmp.ne.s32.totalorder %s71, %s72
    %p86 = scmp.eq.s32.totalorder %s15, 1
    %p87 = por %p85, %p86
    %p89 = scmp.ne.s32.totalorder %s72, %s88
    %p90 = scmp.eq.s32.totalorder %s15, 0
    %p91 = por %p89, %p90
    %s92 = ssub.s32 %s17, %s31
    %p93 = scmp.eq.s32.totalorder %s92, 0
    %s95 = sadd.s32 %s94, 1
    %s96 = scalar_select %p93, %s94, %s95
    %p99 = pneg %p93
    %p100 = scmp.eq.s32.totalorder %s9, 1
    %p101 = por %p99, %p100
    %p102 = scmp.ne.s32.totalorder %s94, %s97
    %p103 = scmp.eq.s32.totalorder %s9, 0
    %p104 = por %p102, %p103
    %p105 = scmp.ne.s32.totalorder %s94, %s97
    %p106 = scmp.eq.s32.totalorder %s14, 1
    %p107 = por %p105, %p106
    %p108 = scmp.ne.s32.totalorder %s97, %s98
    %p109 = scmp.eq.s32.totalorder %s14, 0
    %p110 = por %p108, %p109
    %p111 = scmp.ne.s32.totalorder %s97, %s98
    %p112 = scmp.eq.s32.totalorder %s15, 1
    %p113 = por %p111, %p112
    %p115 = scmp.ne.s32.totalorder %s98, %s114
    %p116 = scmp.eq.s32.totalorder %s15, 0
    %p117 = por %p115, %p116
    %s118 = ssub.s32 %s16, %s35
    %s119 = ssub.s32 %s17, %s31
    %s120 = sor.u32 %s118, %s119
    %p121 = scmp.eq.s32.totalorder %s120, 0
    %s123 = sadd.s32 %s122, 1
    %s124 = scalar_select %p121, %s122, %s123
    %p127 = pneg %p121
    %p128 = scmp.eq.s32.totalorder %s9, 1
    %p129 = por %p127, %p128
    %p130 = scmp.ne.s32.totalorder %s122, %s125
    %p131 = scmp.eq.s32.totalorder %s9, 0
    %p132 = por %p130, %p131
    %p133 = scmp.ne.s32.totalorder %s122, %s125
    %p134 = scmp.eq.s32.totalorder %s14, 1
    %p135 = por %p133, %p134
    %p136 = scmp.ne.s32.totalorder %s125, %s126
    %p137 = scmp.eq.s32.totalorder %s14, 0
    %p138 = por %p136, %p137
    %p139 = scmp.ne.s32.totalorder %s125, %s126
    %p140 = scmp.eq.s32.totalorder %s15, 1
    %p141 = por %p139, %p140
    %p143 = scmp.ne.s32.totalorder %s126, %s142
    %p144 = scmp.eq.s32.totalorder %s15, 0
    %p145 = por %p143, %p144
    %p146 = scmp.le.s32.totalorder 1, %s9
    %p147 = scmp.lt.s32.totalorder %s9, 3
    %p148 = pnand %p146, %p147
    %p149 = pneg %p148
    // Predicated region
    $region9: #{stem.1} parent=5 // pred_check
      _
    $region10: #{stem.1} parent=5 // pred_check_branch
      %151 = sbr.rel (%p148) target = $region12
    $region11: #{stem.1} parent=5 // pred_region
      %s152 = ssub.s32 %s9, 1
      // Predicated region
      $region13: #{stem.1} parent=11 // pred_check
        %p153 = pneg %p84
      $region14: #{stem.1} parent=11 // pred_check_branch
        %155 = sbr.rel (%p153) target = $region16
      $region15: #{stem.1} parent=11 // pred_region
        %s156 = smul.u32 32, %s21
        %p157 = scmp.lt.s32.totalorder %s156, 31
        %s158 = scalar_select %p157, %s156, 31
        %p159 = scmp.lt.s32.totalorder %s20, 0
        %s160 = scalar_select %p159, %s20, 0
        %s161 = sadd.s32 %s160, %s158
        %s162 = smul.addr %s161, 4
        %s163 = scalar_lea.vmem %s1, %s162
        %s164 = smul.u32 32, %s21
      $region16: #{stem.1} parent=11 // pred_fallthru
        _
      // Predicated region
      $region17: #{stem.1} parent=11 // pred_check
        %p165 = pneg %p110
      $region18: #{stem.1} parent=11 // pred_check_branch
        %167 = sbr.rel (%p165) target = $region20
      $region19: #{stem.1} parent=11 // pred_region
        %p168 = scmp.lt.s32.totalorder %s20, 0
        %s169 = scalar_select %p168, %s20, 0
        %s170 = scalar_lea.vmem %s2, %s169
      $region20: #{stem.1} parent=11 // pred_fallthru
        _
    $region12: #{stem.1} parent=5 // pred_fallthru
      _
    %p171 = scmp.lt.s32.totalorder %s9, 2
    // Predicated region
    $region21: #{stem.1} parent=5 // pred_check
      %p172 = pneg %p171
    $region22: #{stem.1} parent=5 // pred_check_branch
      %174 = sbr.rel (%p172) target = $region24
    $region23: #{stem.1} parent=5 // pred_region
      // Predicated region
      $region25: #{stem.1} parent=23 // pred_check
        %p175 = pneg %p50
      $region26: #{stem.1} parent=23 // pred_check_branch
        %177 = sbr.rel (%p175) target = $region28
      $region27: #{stem.1} parent=23 // pred_region
        %s178 = smul.u32 128, %s16
        %s179 = smul.u32 2, %s18
        %p180 = scmp.lt.s32.totalorder %s178, 255
        %s181 = scalar_select %p180, %s178, 255
        %p182 = scmp.lt.s32.totalorder %s179, 1
        %s183 = scalar_select %p182, %s179, 1
        %s184 = smul.addr %s181, 2
        %s185 = sadd.s32 %s183, %s184
        %s186 = smul.addr %s185, 4
        %s187 = scalar_lea.vmem %s0, %s186
        %s188 = smul.u32 128, %s16
        %s189 = smul.u32 2, %s18
      $region28: #{stem.1} parent=23 // pred_fallthru
        _
    $region24: #{stem.1} parent=5 // pred_fallthru
      _
    %p190 = scmp.le.s32.totalorder 1, %s9
    %p191 = scmp.lt.s32.totalorder %s9, 3
    %p192 = pnand %p190, %p191
    %p193 = pneg %p192
    // Predicated region
    $region29: #{stem.1} parent=5 // pred_check
      _
    $region30: #{stem.1} parent=5 // pred_check_branch
      %195 = sbr.rel (%p192) target = $region32
    $region31: #{stem.1} parent=5 // pred_region
      %s196 = ssub.s32 %s9, 1
      %s197 = smul.u32 128, %s19
      %s198 = smul.u32 2, %s21
      %p199 = scmp.lt.s32.totalorder %s197, 255
      %s200 = scalar_select %p199, %s197, 255
      %p201 = scmp.lt.s32.totalorder %s198, 1
      %s202 = scalar_select %p201, %s198, 1
      %s203 = smul.addr %s200, 2
      %s204 = sadd.s32 %s202, %s203
      %s205 = smul.addr %s204, 4
      %s206 = scalar_lea.vmem %s0, %s205
      %p207 = pneg %p56
      %p208 = pneg %p53
      %s209 = smul.u32 32, %s21
      %p210 = scmp.lt.s32.totalorder %s209, 31
      %s211 = scalar_select %p210, %s209, 31
      %p212 = scmp.lt.s32.totalorder %s20, 0
      %s213 = scalar_select %p212, %s20, 0
      %s214 = sadd.s32 %s213, %s211
      %s215 = smul.addr %s214, 4
      %s216 = scalar_lea.vmem %s1, %s215
      %p217 = pneg %p84
      %p218 = pneg %p81
      %p219 = scmp.lt.s32.totalorder %s20, 0
      %s220 = scalar_select %p219, %s20, 0
      %s221 = scalar_lea.vmem %s2, %s220
      %p222 = pneg %p110
      %p223 = pneg %p107
      %p224 = pneg %p138
      %p225 = pneg %p135
      %s226 = smul.u32 128, %s19
      %p227 = scmp.lt.s32.totalorder %s226, 255
      %s228 = scalar_select %p227, %s226, 255
      %p229 = scmp.lt.s32.totalorder %s20, 0
      %s230 = scalar_select %p229, %s20, 0
      %s231 = sadd.s32 %s230, %s228
      %s232 = smul.addr %s231, 4
      %s233 = scalar_lea.vmem %s3, %s232
      %s234 = smul.u32 128, %s19
      %s235 = smul.u32 2, %s21
      %p236 = scmp.lt.s32.totalorder %s234, 255
      %s237 = scalar_select %p236, %s234, 255
      %p238 = scmp.lt.s32.totalorder %s235, 1
      %s239 = scalar_select %p238, %s235, 1
      %s240 = smul.addr %s237, 2
      %s241 = sadd.s32 %s239, %s240
      %s242 = smul.addr %s241, 4
      %s243 = scalar_lea.vmem %s0, %s242
      %s244 = smul.u32 128, %s19
      %s245 = smul.u32 2, %s21
      %s246 = smul.u32 32, %s21
      %p247 = scmp.lt.s32.totalorder %s246, 31
      %s248 = scalar_select %p247, %s246, 31
      %p249 = scmp.lt.s32.totalorder %s20, 0
      %s250 = scalar_select %p249, %s20, 0
      %s251 = sadd.s32 %s250, %s248
      %s252 = smul.addr %s251, 4
      %s253 = scalar_lea.vmem %s1, %s252
      %s254 = smul.u32 32, %s21
      %p255 = scmp.lt.s32.totalorder %s20, 0
      %s256 = scalar_select %p255, %s20, 0
      %s257 = scalar_lea.vmem %s2, %s256
      %s258 = smul.u32 128, %s19
      %p259 = scmp.lt.s32.totalorder %s258, 255
      %s260 = scalar_select %p259, %s258, 255
      %p261 = scmp.lt.s32.totalorder %s20, 0
      %s262 = scalar_select %p261, %s20, 0
      %s263 = sadd.s32 %s262, %s260
      %s264 = smul.addr %s263, 4
      %s265 = scalar_lea.vmem %s3, %s264
      %s266 = smul.u32 128, %s19
      %v268 = vld [vmem:[%s243] sm:$0xff]
      %v269 = vld [vmem:[%s243 + $0x8] sm:$0xff]
      %v270 = vld [vmem:[%s243 + $0x10] sm:$0xff]
      %v271 = vld [vmem:[%s243 + $0x18] sm:$0xff]
      %v272 = vld [vmem:[%s243 + $0x20] sm:$0xff]
      %v273 = vld [vmem:[%s243 + $0x28] sm:$0xff]
      %v274 = vld [vmem:[%s243 + $0x30] sm:$0xff]
      %v275 = vld [vmem:[%s243 + $0x38] sm:$0xff]
      %v276 = vld [vmem:[%s243 + $0x40] sm:$0xff]
      %v277 = vld [vmem:[%s243 + $0x48] sm:$0xff]
      %v278 = vld [vmem:[%s243 + $0x50] sm:$0xff]
      %v279 = vld [vmem:[%s243 + $0x58] sm:$0xff]
      %v280 = vld [vmem:[%s243 + $0x60] sm:$0xff]
      %v281 = vld [vmem:[%s243 + $0x68] sm:$0xff]
      %v282 = vld [vmem:[%s243 + $0x70] sm:$0xff]
      %v283 = vld [vmem:[%s243 + $0x78] sm:$0xff]
      %v284 = vld [vmem:[%s243 + $0x80] sm:$0xff]
      %v285 = vld [vmem:[%s243 + $0x88] sm:$0xff]
      %v286 = vld [vmem:[%s243 + $0x90] sm:$0xff]
      %v287 = vld [vmem:[%s243 + $0x98] sm:$0xff]
      %v288 = vld [vmem:[%s243 + $0xa0] sm:$0xff]
      %v289 = vld [vmem:[%s243 + $0xa8] sm:$0xff]
      %v290 = vld [vmem:[%s243 + $0xb0] sm:$0xff]
      %v291 = vld [vmem:[%s243 + $0xb8] sm:$0xff]
      %v292 = vld [vmem:[%s243 + $0xc0] sm:$0xff]
      %v293 = vld [vmem:[%s243 + $0xc8] sm:$0xff]
      %v294 = vld [vmem:[%s243 + $0xd0] sm:$0xff]
      %v295 = vld [vmem:[%s243 + $0xd8] sm:$0xff]
      %v296 = vld [vmem:[%s243 + $0xe0] sm:$0xff]
      %v297 = vld [vmem:[%s243 + $0xe8] sm:$0xff]
      %v298 = vld [vmem:[%s243 + $0xf0] sm:$0xff]
      %v299 = vld [vmem:[%s243 + $0xf8] sm:$0xff]
      %v300 = vld [vmem:[%s243 + $0x100] sm:$0xff]
      %v301 = vld [vmem:[%s243 + $0x108] sm:$0xff]
      %v302 = vld [vmem:[%s243 + $0x110] sm:$0xff]
      %v303 = vld [vmem:[%s243 + $0x118] sm:$0xff]
      %v304 = vld [vmem:[%s243 + $0x120] sm:$0xff]
      %v305 = vld [vmem:[%s243 + $0x128] sm:$0xff]
      %v306 = vld [vmem:[%s243 + $0x130] sm:$0xff]
      %v307 = vld [vmem:[%s243 + $0x138] sm:$0xff]
      %v308 = vld [vmem:[%s243 + $0x140] sm:$0xff]
      %v309 = vld [vmem:[%s243 + $0x148] sm:$0xff]
      %v310 = vld [vmem:[%s243 + $0x150] sm:$0xff]
      %v311 = vld [vmem:[%s243 + $0x158] sm:$0xff]
      %v312 = vld [vmem:[%s243 + $0x160] sm:$0xff]
      %v313 = vld [vmem:[%s243 + $0x168] sm:$0xff]
      %v314 = vld [vmem:[%s243 + $0x170] sm:$0xff]
      %v315 = vld [vmem:[%s243 + $0x178] sm:$0xff]
      %v316 = vld [vmem:[%s243 + $0x180] sm:$0xff]
      %v317 = vld [vmem:[%s243 + $0x188] sm:$0xff]
      %v318 = vld [vmem:[%s243 + $0x190] sm:$0xff]
      %v319 = vld [vmem:[%s243 + $0x198] sm:$0xff]
      %v320 = vld [vmem:[%s243 + $0x1a0] sm:$0xff]
      %v321 = vld [vmem:[%s243 + $0x1a8] sm:$0xff]
      %v322 = vld [vmem:[%s243 + $0x1b0] sm:$0xff]
      %v323 = vld [vmem:[%s243 + $0x1b8] sm:$0xff]
      %v324 = vld [vmem:[%s243 + $0x1c0] sm:$0xff]
      %v325 = vld [vmem:[%s243 + $0x1c8] sm:$0xff]
      %v326 = vld [vmem:[%s243 + $0x1d0] sm:$0xff]
      %v327 = vld [vmem:[%s243 + $0x1d8] sm:$0xff]
      %v328 = vld [vmem:[%s243 + $0x1e0] sm:$0xff]
      %v329 = vld [vmem:[%s243 + $0x1e8] sm:$0xff]
      %v330 = vld [vmem:[%s243 + $0x1f0] sm:$0xff]
      %v331 = vld [vmem:[%s243 + $0x1f8] sm:$0xff]
      %v332 = vld [vmem:[%s243 + $0x200] sm:$0xff]
      %v333 = vld [vmem:[%s243 + $0x208] sm:$0xff]
      %v334 = vld [vmem:[%s243 + $0x210] sm:$0xff]
      %v335 = vld [vmem:[%s243 + $0x218] sm:$0xff]
      %v336 = vld [vmem:[%s243 + $0x220] sm:$0xff]
      %v337 = vld [vmem:[%s243 + $0x228] sm:$0xff]
      %v338 = vld [vmem:[%s243 + $0x230] sm:$0xff]
      %v339 = vld [vmem:[%s243 + $0x238] sm:$0xff]
      %v340 = vld [vmem:[%s243 + $0x240] sm:$0xff]
      %v341 = vld [vmem:[%s243 + $0x248] sm:$0xff]
      %v342 = vld [vmem:[%s243 + $0x250] sm:$0xff]
      %v343 = vld [vmem:[%s243 + $0x258] sm:$0xff]
      %v344 = vld [vmem:[%s243 + $0x260] sm:$0xff]
      %v345 = vld [vmem:[%s243 + $0x268] sm:$0xff]
      %v346 = vld [vmem:[%s243 + $0x270] sm:$0xff]
      %v347 = vld [vmem:[%s243 + $0x278] sm:$0xff]
      %v348 = vld [vmem:[%s243 + $0x280] sm:$0xff]
      %v349 = vld [vmem:[%s243 + $0x288] sm:$0xff]
      %v350 = vld [vmem:[%s243 + $0x290] sm:$0xff]
      %v351 = vld [vmem:[%s243 + $0x298] sm:$0xff]
      %v352 = vld [vmem:[%s243 + $0x2a0] sm:$0xff]
      %v353 = vld [vmem:[%s243 + $0x2a8] sm:$0xff]
      %v354 = vld [vmem:[%s243 + $0x2b0] sm:$0xff]
      %v355 = vld [vmem:[%s243 + $0x2b8] sm:$0xff]
      %v356 = vld [vmem:[%s243 + $0x2c0] sm:$0xff]
      %v357 = vld [vmem:[%s243 + $0x2c8] sm:$0xff]
      %v358 = vld [vmem:[%s243 + $0x2d0] sm:$0xff]
      %v359 = vld [vmem:[%s243 + $0x2d8] sm:$0xff]
      %v360 = vld [vmem:[%s243 + $0x2e0] sm:$0xff]
      %v361 = vld [vmem:[%s243 + $0x2e8] sm:$0xff]
      %v362 = vld [vmem:[%s243 + $0x2f0] sm:$0xff]
      %v363 = vld [vmem:[%s243 + $0x2f8] sm:$0xff]
      %v364 = vld [vmem:[%s243 + $0x300] sm:$0xff]
      %v365 = vld [vmem:[%s243 + $0x308] sm:$0xff]
      %v366 = vld [vmem:[%s243 + $0x310] sm:$0xff]
      %v367 = vld [vmem:[%s243 + $0x318] sm:$0xff]
      %v368 = vld [vmem:[%s243 + $0x320] sm:$0xff]
      %v369 = vld [vmem:[%s243 + $0x328] sm:$0xff]
      %v370 = vld [vmem:[%s243 + $0x330] sm:$0xff]
      %v371 = vld [vmem:[%s243 + $0x338] sm:$0xff]
      %v372 = vld [vmem:[%s243 + $0x340] sm:$0xff]
      %v373 = vld [vmem:[%s243 + $0x348] sm:$0xff]
      %v374 = vld [vmem:[%s243 + $0x350] sm:$0xff]
      %v375 = vld [vmem:[%s243 + $0x358] sm:$0xff]
      %v376 = vld [vmem:[%s243 + $0x360] sm:$0xff]
      %v377 = vld [vmem:[%s243 + $0x368] sm:$0xff]
      %v378 = vld [vmem:[%s243 + $0x370] sm:$0xff]
      %v379 = vld [vmem:[%s243 + $0x378] sm:$0xff]
      %v380 = vld [vmem:[%s243 + $0x380] sm:$0xff]
      %v381 = vld [vmem:[%s243 + $0x388] sm:$0xff]
      %v382 = vld [vmem:[%s243 + $0x390] sm:$0xff]
      %v383 = vld [vmem:[%s243 + $0x398] sm:$0xff]
      %v384 = vld [vmem:[%s243 + $0x3a0] sm:$0xff]
      %v385 = vld [vmem:[%s243 + $0x3a8] sm:$0xff]
      %v386 = vld [vmem:[%s243 + $0x3b0] sm:$0xff]
      %v387 = vld [vmem:[%s243 + $0x3b8] sm:$0xff]
      %v388 = vld [vmem:[%s243 + $0x3c0] sm:$0xff]
      %v389 = vld [vmem:[%s243 + $0x3c8] sm:$0xff]
      %v390 = vld [vmem:[%s243 + $0x3d0] sm:$0xff]
      %v391 = vld [vmem:[%s243 + $0x3d8] sm:$0xff]
      %v392 = vld [vmem:[%s243 + $0x3e0] sm:$0xff]
      %v393 = vld [vmem:[%s243 + $0x3e8] sm:$0xff]
      %v394 = vld [vmem:[%s243 + $0x3f0] sm:$0xff]
      %v395 = vld [vmem:[%s243 + $0x3f8] sm:$0xff]
      %v396 = vld [vmem:[%s253] sm:$0xf]
      %v397 = vld [vmem:[%s253 + $0x4] sm:$0xf]
      %v398 = vld [vmem:[%s253 + $0x8] sm:$0xf]
      %v399 = vld [vmem:[%s253 + $0xc] sm:$0xf]
      %v400 = vld [vmem:[%s253 + $0x10] sm:$0xf]
      %v401 = vld [vmem:[%s253 + $0x14] sm:$0xf]
      %v402 = vld [vmem:[%s253 + $0x18] sm:$0xf]
      %v403 = vld [vmem:[%s253 + $0x1c] sm:$0xf]
      %v404 = vld [vmem:[%s253 + $0x20] sm:$0xf]
      %v405 = vld [vmem:[%s253 + $0x24] sm:$0xf]
      %v406 = vld [vmem:[%s253 + $0x28] sm:$0xf]
      %v407 = vld [vmem:[%s253 + $0x2c] sm:$0xf]
      %v408 = vld [vmem:[%s253 + $0x30] sm:$0xf]
      %v409 = vld [vmem:[%s253 + $0x34] sm:$0xf]
      %v410 = vld [vmem:[%s253 + $0x38] sm:$0xf]
      %v411 = vld [vmem:[%s253 + $0x3c] sm:$0xf]
      %v412 = vld [vmem:[%s253 + $0x40] sm:$0xf]
      %v413 = vld [vmem:[%s253 + $0x44] sm:$0xf]
      %v414 = vld [vmem:[%s253 + $0x48] sm:$0xf]
      %v415 = vld [vmem:[%s253 + $0x4c] sm:$0xf]
      %v416 = vld [vmem:[%s253 + $0x50] sm:$0xf]
      %v417 = vld [vmem:[%s253 + $0x54] sm:$0xf]
      %v418 = vld [vmem:[%s253 + $0x58] sm:$0xf]
      %v419 = vld [vmem:[%s253 + $0x5c] sm:$0xf]
      %v420 = vld [vmem:[%s253 + $0x60] sm:$0xf]
      %v421 = vld [vmem:[%s253 + $0x64] sm:$0xf]
      %v422 = vld [vmem:[%s253 + $0x68] sm:$0xf]
      %v423 = vld [vmem:[%s253 + $0x6c] sm:$0xf]
      %v424 = vld [vmem:[%s253 + $0x70] sm:$0xf]
      %v425 = vld [vmem:[%s253 + $0x74] sm:$0xf]
      %v426 = vld [vmem:[%s253 + $0x78] sm:$0xf]
      %v427 = vld [vmem:[%s253 + $0x7c] sm:$0xf]
      %v428 = vld [vmem:[%s257] sm:$0x1]
      %v430 = vlaneseq
      %v431 = vshrl.u32 %v430, 7
      %v432 = vsub.s32 0, %v431
      %v433 = vrot.slane %v428, %v432
      %v563 = vunpack.c.l.b16 %v268
      %v564 = vunpack.c.h.b16 %v268
      %v565 = vunpack.c.l.b16 %v269
      %v566 = vunpack.c.h.b16 %v269
      %v567 = vunpack.c.l.b16 %v270
      %v568 = vunpack.c.h.b16 %v270
      %v569 = vunpack.c.l.b16 %v271
      %v570 = vunpack.c.h.b16 %v271
      %v571 = vunpack.c.l.b16 %v272
      %v572 = vunpack.c.h.b16 %v272
      %v573 = vunpack.c.l.b16 %v273
      %v574 = vunpack.c.h.b16 %v273
      %v575 = vunpack.c.l.b16 %v274
      %v576 = vunpack.c.h.b16 %v274
      %v577 = vunpack.c.l.b16 %v275
      %v578 = vunpack.c.h.b16 %v275
      %v579 = vunpack.c.l.b16 %v276
      %v580 = vunpack.c.h.b16 %v276
      %v581 = vunpack.c.l.b16 %v277
      %v582 = vunpack.c.h.b16 %v277
      %v583 = vunpack.c.l.b16 %v278
      %v584 = vunpack.c.h.b16 %v278
      %v585 = vunpack.c.l.b16 %v279
      %v586 = vunpack.c.h.b16 %v279
      %v587 = vunpack.c.l.b16 %v280
      %v588 = vunpack.c.h.b16 %v280
      %v589 = vunpack.c.l.b16 %v281
      %v590 = vunpack.c.h.b16 %v281
      %v591 = vunpack.c.l.b16 %v282
      %v592 = vunpack.c.h.b16 %v282
      %v593 = vunpack.c.l.b16 %v283
      %v594 = vunpack.c.h.b16 %v283
      %v595 = vunpack.c.l.b16 %v284
      %v596 = vunpack.c.h.b16 %v284
      %v597 = vunpack.c.l.b16 %v285
      %v598 = vunpack.c.h.b16 %v285
      %v599 = vunpack.c.l.b16 %v286
      %v600 = vunpack.c.h.b16 %v286
      %v601 = vunpack.c.l.b16 %v287
      %v602 = vunpack.c.h.b16 %v287
      %v603 = vunpack.c.l.b16 %v288
      %v604 = vunpack.c.h.b16 %v288
      %v605 = vunpack.c.l.b16 %v289
      %v606 = vunpack.c.h.b16 %v289
      %v607 = vunpack.c.l.b16 %v290
      %v608 = vunpack.c.h.b16 %v290
      %v609 = vunpack.c.l.b16 %v291
      %v610 = vunpack.c.h.b16 %v291
      %v611 = vunpack.c.l.b16 %v292
      %v612 = vunpack.c.h.b16 %v292
      %v613 = vunpack.c.l.b16 %v293
      %v614 = vunpack.c.h.b16 %v293
      %v615 = vunpack.c.l.b16 %v294
      %v616 = vunpack.c.h.b16 %v294
      %v617 = vunpack.c.l.b16 %v295
      %v618 = vunpack.c.h.b16 %v295
      %v619 = vunpack.c.l.b16 %v296
      %v620 = vunpack.c.h.b16 %v296
      %v621 = vunpack.c.l.b16 %v297
      %v622 = vunpack.c.h.b16 %v297
      %v623 = vunpack.c.l.b16 %v298
      %v624 = vunpack.c.h.b16 %v298
      %v625 = vunpack.c.l.b16 %v299
      %v626 = vunpack.c.h.b16 %v299
      %v627 = vunpack.c.l.b16 %v300
      %v628 = vunpack.c.h.b16 %v300
      %v629 = vunpack.c.l.b16 %v301
      %v630 = vunpack.c.h.b16 %v301
      %v631 = vunpack.c.l.b16 %v302
      %v632 = vunpack.c.h.b16 %v302
      %v633 = vunpack.c.l.b16 %v303
      %v634 = vunpack.c.h.b16 %v303
      %v635 = vunpack.c.l.b16 %v304
      %v636 = vunpack.c.h.b16 %v304
      %v637 = vunpack.c.l.b16 %v305
      %v638 = vunpack.c.h.b16 %v305
      %v639 = vunpack.c.l.b16 %v306
      %v640 = vunpack.c.h.b16 %v306
      %v641 = vunpack.c.l.b16 %v307
      %v642 = vunpack.c.h.b16 %v307
      %v643 = vunpack.c.l.b16 %v308
      %v644 = vunpack.c.h.b16 %v308
      %v645 = vunpack.c.l.b16 %v309
      %v646 = vunpack.c.h.b16 %v309
      %v647 = vunpack.c.l.b16 %v310
      %v648 = vunpack.c.h.b16 %v310
      %v649 = vunpack.c.l.b16 %v311
      %v650 = vunpack.c.h.b16 %v311
      %v651 = vunpack.c.l.b16 %v312
      %v652 = vunpack.c.h.b16 %v312
      %v653 = vunpack.c.l.b16 %v313
      %v654 = vunpack.c.h.b16 %v313
      %v655 = vunpack.c.l.b16 %v314
      %v656 = vunpack.c.h.b16 %v314
      %v657 = vunpack.c.l.b16 %v315
      %v658 = vunpack.c.h.b16 %v315
      %v659 = vunpack.c.l.b16 %v316
      %v660 = vunpack.c.h.b16 %v316
      %v661 = vunpack.c.l.b16 %v317
      %v662 = vunpack.c.h.b16 %v317
      %v663 = vunpack.c.l.b16 %v318
      %v664 = vunpack.c.h.b16 %v318
      %v665 = vunpack.c.l.b16 %v319
      %v666 = vunpack.c.h.b16 %v319
      %v667 = vunpack.c.l.b16 %v320
      %v668 = vunpack.c.h.b16 %v320
      %v669 = vunpack.c.l.b16 %v321
      %v670 = vunpack.c.h.b16 %v321
      %v671 = vunpack.c.l.b16 %v322
      %v672 = vunpack.c.h.b16 %v322
      %v673 = vunpack.c.l.b16 %v323
      %v674 = vunpack.c.h.b16 %v323
      %v675 = vunpack.c.l.b16 %v324
      %v676 = vunpack.c.h.b16 %v324
      %v677 = vunpack.c.l.b16 %v325
      %v678 = vunpack.c.h.b16 %v325
      %v679 = vunpack.c.l.b16 %v326
      %v680 = vunpack.c.h.b16 %v326
      %v681 = vunpack.c.l.b16 %v327
      %v682 = vunpack.c.h.b16 %v327
      %v683 = vunpack.c.l.b16 %v328
      %v684 = vunpack.c.h.b16 %v328
      %v685 = vunpack.c.l.b16 %v329
      %v686 = vunpack.c.h.b16 %v329
      %v687 = vunpack.c.l.b16 %v330
      %v688 = vunpack.c.h.b16 %v330
      %v689 = vunpack.c.l.b16 %v331
      %v690 = vunpack.c.h.b16 %v331
      %v691 = vunpack.c.l.b16 %v332
      %v692 = vunpack.c.h.b16 %v332
      %v693 = vunpack.c.l.b16 %v333
      %v694 = vunpack.c.h.b16 %v333
      %v695 = vunpack.c.l.b16 %v334
      %v696 = vunpack.c.h.b16 %v334
      %v697 = vunpack.c.l.b16 %v335
      %v698 = vunpack.c.h.b16 %v335
      %v699 = vunpack.c.l.b16 %v336
      %v700 = vunpack.c.h.b16 %v336
      %v701 = vunpack.c.l.b16 %v337
      %v702 = vunpack.c.h.b16 %v337
      %v703 = vunpack.c.l.b16 %v338
      %v704 = vunpack.c.h.b16 %v338
      %v705 = vunpack.c.l.b16 %v339
      %v706 = vunpack.c.h.b16 %v339
      %v707 = vunpack.c.l.b16 %v340
      %v708 = vunpack.c.h.b16 %v340
      %v709 = vunpack.c.l.b16 %v341
      %v710 = vunpack.c.h.b16 %v341
      %v711 = vunpack.c.l.b16 %v342
      %v712 = vunpack.c.h.b16 %v342
      %v713 = vunpack.c.l.b16 %v343
      %v714 = vunpack.c.h.b16 %v343
      %v715 = vunpack.c.l.b16 %v344
      %v716 = vunpack.c.h.b16 %v344
      %v717 = vunpack.c.l.b16 %v345
      %v718 = vunpack.c.h.b16 %v345
      %v719 = vunpack.c.l.b16 %v346
      %v720 = vunpack.c.h.b16 %v346
      %v721 = vunpack.c.l.b16 %v347
      %v722 = vunpack.c.h.b16 %v347
      %v723 = vunpack.c.l.b16 %v348
      %v724 = vunpack.c.h.b16 %v348
      %v725 = vunpack.c.l.b16 %v349
      %v726 = vunpack.c.h.b16 %v349
      %v727 = vunpack.c.l.b16 %v350
      %v728 = vunpack.c.h.b16 %v350
      %v729 = vunpack.c.l.b16 %v351
      %v730 = vunpack.c.h.b16 %v351
      %v731 = vunpack.c.l.b16 %v352
      %v732 = vunpack.c.h.b16 %v352
      %v733 = vunpack.c.l.b16 %v353
      %v734 = vunpack.c.h.b16 %v353
      %v735 = vunpack.c.l.b16 %v354
      %v736 = vunpack.c.h.b16 %v354
      %v737 = vunpack.c.l.b16 %v355
      %v738 = vunpack.c.h.b16 %v355
      %v739 = vunpack.c.l.b16 %v356
      %v740 = vunpack.c.h.b16 %v356
      %v741 = vunpack.c.l.b16 %v357
      %v742 = vunpack.c.h.b16 %v357
      %v743 = vunpack.c.l.b16 %v358
      %v744 = vunpack.c.h.b16 %v358
      %v745 = vunpack.c.l.b16 %v359
      %v746 = vunpack.c.h.b16 %v359
      %v747 = vunpack.c.l.b16 %v360
      %v748 = vunpack.c.h.b16 %v360
      %v749 = vunpack.c.l.b16 %v361
      %v750 = vunpack.c.h.b16 %v361
      %v751 = vunpack.c.l.b16 %v362
      %v752 = vunpack.c.h.b16 %v362
      %v753 = vunpack.c.l.b16 %v363
      %v754 = vunpack.c.h.b16 %v363
      %v755 = vunpack.c.l.b16 %v364
      %v756 = vunpack.c.h.b16 %v364
      %v757 = vunpack.c.l.b16 %v365
      %v758 = vunpack.c.h.b16 %v365
      %v759 = vunpack.c.l.b16 %v366
      %v760 = vunpack.c.h.b16 %v366
      %v761 = vunpack.c.l.b16 %v367
      %v762 = vunpack.c.h.b16 %v367
      %v763 = vunpack.c.l.b16 %v368
      %v764 = vunpack.c.h.b16 %v368
      %v765 = vunpack.c.l.b16 %v369
      %v766 = vunpack.c.h.b16 %v369
      %v767 = vunpack.c.l.b16 %v370
      %v768 = vunpack.c.h.b16 %v370
      %v769 = vunpack.c.l.b16 %v371
      %v770 = vunpack.c.h.b16 %v371
      %v771 = vunpack.c.l.b16 %v372
      %v772 = vunpack.c.h.b16 %v372
      %v773 = vunpack.c.l.b16 %v373
      %v774 = vunpack.c.h.b16 %v373
      %v775 = vunpack.c.l.b16 %v374
      %v776 = vunpack.c.h.b16 %v374
      %v777 = vunpack.c.l.b16 %v375
      %v778 = vunpack.c.h.b16 %v375
      %v779 = vunpack.c.l.b16 %v376
      %v780 = vunpack.c.h.b16 %v376
      %v781 = vunpack.c.l.b16 %v377
      %v782 = vunpack.c.h.b16 %v377
      %v783 = vunpack.c.l.b16 %v378
      %v784 = vunpack.c.h.b16 %v378
      %v785 = vunpack.c.l.b16 %v379
      %v786 = vunpack.c.h.b16 %v379
      %v787 = vunpack.c.l.b16 %v380
      %v788 = vunpack.c.h.b16 %v380
      %v789 = vunpack.c.l.b16 %v381
      %v790 = vunpack.c.h.b16 %v381
      %v791 = vunpack.c.l.b16 %v382
      %v792 = vunpack.c.h.b16 %v382
      %v793 = vunpack.c.l.b16 %v383
      %v794 = vunpack.c.h.b16 %v383
      %v795 = vunpack.c.l.b16 %v384
      %v796 = vunpack.c.h.b16 %v384
      %v797 = vunpack.c.l.b16 %v385
      %v798 = vunpack.c.h.b16 %v385
      %v799 = vunpack.c.l.b16 %v386
      %v800 = vunpack.c.h.b16 %v386
      %v801 = vunpack.c.l.b16 %v387
      %v802 = vunpack.c.h.b16 %v387
      %v803 = vunpack.c.l.b16 %v388
      %v804 = vunpack.c.h.b16 %v388
      %v805 = vunpack.c.l.b16 %v389
      %v806 = vunpack.c.h.b16 %v389
      %v807 = vunpack.c.l.b16 %v390
      %v808 = vunpack.c.h.b16 %v390
      %v809 = vunpack.c.l.b16 %v391
      %v810 = vunpack.c.h.b16 %v391
      %v811 = vunpack.c.l.b16 %v392
      %v812 = vunpack.c.h.b16 %v392
      %v813 = vunpack.c.l.b16 %v393
      %v814 = vunpack.c.h.b16 %v393
      %v815 = vunpack.c.l.b16 %v394
      %v816 = vunpack.c.h.b16 %v394
      %v817 = vunpack.c.l.b16 %v395
      %v818 = vunpack.c.h.b16 %v395
      %v819 = vpack.c.b16 %v565, %v563
      %v820 = vpack.c.b16 %v566, %v564
      %v821 = vpack.c.b16 %v569, %v567
      %v822 = vpack.c.b16 %v570, %v568
      %v823 = vpack.c.b16 %v573, %v571
      %v824 = vpack.c.b16 %v574, %v572
      %v825 = vpack.c.b16 %v577, %v575
      %v826 = vpack.c.b16 %v578, %v576
      %v827 = vpack.c.b16 %v581, %v579
      %v828 = vpack.c.b16 %v582, %v580
      %v829 = vpack.c.b16 %v585, %v583
      %v830 = vpack.c.b16 %v586, %v584
      %v831 = vpack.c.b16 %v589, %v587
      %v832 = vpack.c.b16 %v590, %v588
      %v833 = vpack.c.b16 %v593, %v591
      %v834 = vpack.c.b16 %v594, %v592
      %v835 = vpack.c.b16 %v597, %v595
      %v836 = vpack.c.b16 %v598, %v596
      %v837 = vpack.c.b16 %v601, %v599
      %v838 = vpack.c.b16 %v602, %v600
      %v839 = vpack.c.b16 %v605, %v603
      %v840 = vpack.c.b16 %v606, %v604
      %v841 = vpack.c.b16 %v609, %v607
      %v842 = vpack.c.b16 %v610, %v608
      %v843 = vpack.c.b16 %v613, %v611
      %v844 = vpack.c.b16 %v614, %v612
      %v845 = vpack.c.b16 %v617, %v615
      %v846 = vpack.c.b16 %v618, %v616
      %v847 = vpack.c.b16 %v621, %v619
      %v848 = vpack.c.b16 %v622, %v620
      %v849 = vpack.c.b16 %v625, %v623
      %v850 = vpack.c.b16 %v626, %v624
      %v851 = vpack.c.b16 %v629, %v627
      %v852 = vpack.c.b16 %v630, %v628
      %v853 = vpack.c.b16 %v633, %v631
      %v854 = vpack.c.b16 %v634, %v632
      %v855 = vpack.c.b16 %v637, %v635
      %v856 = vpack.c.b16 %v638, %v636
      %v857 = vpack.c.b16 %v641, %v639
      %v858 = vpack.c.b16 %v642, %v640
      %v859 = vpack.c.b16 %v645, %v643
      %v860 = vpack.c.b16 %v646, %v644
      %v861 = vpack.c.b16 %v649, %v647
      %v862 = vpack.c.b16 %v650, %v648
      %v863 = vpack.c.b16 %v653, %v651
      %v864 = vpack.c.b16 %v654, %v652
      %v865 = vpack.c.b16 %v657, %v655
      %v866 = vpack.c.b16 %v658, %v656
      %v867 = vpack.c.b16 %v661, %v659
      %v868 = vpack.c.b16 %v662, %v660
      %v869 = vpack.c.b16 %v665, %v663
      %v870 = vpack.c.b16 %v666, %v664
      %v871 = vpack.c.b16 %v669, %v667
      %v872 = vpack.c.b16 %v670, %v668
      %v873 = vpack.c.b16 %v673, %v671
      %v874 = vpack.c.b16 %v674, %v672
      %v875 = vpack.c.b16 %v677, %v675
      %v876 = vpack.c.b16 %v678, %v676
      %v877 = vpack.c.b16 %v681, %v679
      %v878 = vpack.c.b16 %v682, %v680
      %v879 = vpack.c.b16 %v685, %v683
      %v880 = vpack.c.b16 %v686, %v684
      %v881 = vpack.c.b16 %v689, %v687
      %v882 = vpack.c.b16 %v690, %v688
      %v883 = vpack.c.b16 %v693, %v691
      %v884 = vpack.c.b16 %v694, %v692
      %v885 = vpack.c.b16 %v697, %v695
      %v886 = vpack.c.b16 %v698, %v696
      %v887 = vpack.c.b16 %v701, %v699
      %v888 = vpack.c.b16 %v702, %v700
      %v889 = vpack.c.b16 %v705, %v703
      %v890 = vpack.c.b16 %v706, %v704
      %v891 = vpack.c.b16 %v709, %v707
      %v892 = vpack.c.b16 %v710, %v708
      %v893 = vpack.c.b16 %v713, %v711
      %v894 = vpack.c.b16 %v714, %v712
      %v895 = vpack.c.b16 %v717, %v715
      %v896 = vpack.c.b16 %v718, %v716
      %v897 = vpack.c.b16 %v721, %v719
      %v898 = vpack.c.b16 %v722, %v720
      %v899 = vpack.c.b16 %v725, %v723
      %v900 = vpack.c.b16 %v726, %v724
      %v901 = vpack.c.b16 %v729, %v727
      %v902 = vpack.c.b16 %v730, %v728
      %v903 = vpack.c.b16 %v733, %v731
      %v904 = vpack.c.b16 %v734, %v732
      %v905 = vpack.c.b16 %v737, %v735
      %v906 = vpack.c.b16 %v738, %v736
      %v907 = vpack.c.b16 %v741, %v739
      %v908 = vpack.c.b16 %v742, %v740
      %v909 = vpack.c.b16 %v745, %v743
      %v910 = vpack.c.b16 %v746, %v744
      %v911 = vpack.c.b16 %v749, %v747
      %v912 = vpack.c.b16 %v750, %v748
      %v913 = vpack.c.b16 %v753, %v751
      %v914 = vpack.c.b16 %v754, %v752
      %v915 = vpack.c.b16 %v757, %v755
      %v916 = vpack.c.b16 %v758, %v756
      %v917 = vpack.c.b16 %v761, %v759
      %v918 = vpack.c.b16 %v762, %v760
      %v919 = vpack.c.b16 %v765, %v763
      %v920 = vpack.c.b16 %v766, %v764
      %v921 = vpack.c.b16 %v769, %v767
      %v922 = vpack.c.b16 %v770, %v768
      %v923 = vpack.c.b16 %v773, %v771
      %v924 = vpack.c.b16 %v774, %v772
      %v925 = vpack.c.b16 %v777, %v775
      %v926 = vpack.c.b16 %v778, %v776
      %v927 = vpack.c.b16 %v781, %v779
      %v928 = vpack.c.b16 %v782, %v780
      %v929 = vpack.c.b16 %v785, %v783
      %v930 = vpack.c.b16 %v786, %v784
      %v931 = vpack.c.b16 %v789, %v787
      %v932 = vpack.c.b16 %v790, %v788
      %v933 = vpack.c.b16 %v793, %v791
      %v934 = vpack.c.b16 %v794, %v792
      %v935 = vpack.c.b16 %v797, %v795
      %v936 = vpack.c.b16 %v798, %v796
      %v937 = vpack.c.b16 %v801, %v799
      %v938 = vpack.c.b16 %v802, %v800
      %v939 = vpack.c.b16 %v805, %v803
      %v940 = vpack.c.b16 %v806, %v804
      %v941 = vpack.c.b16 %v809, %v807
      %v942 = vpack.c.b16 %v810, %v808
      %v943 = vpack.c.b16 %v813, %v811
      %v944 = vpack.c.b16 %v814, %v812
      %v945 = vpack.c.b16 %v817, %v815
      %v946 = vpack.c.b16 %v818, %v816
      %v1107 = vunpack.c.l.b16 %v396
      %v1108 = vunpack.c.l.b16 %v397
      %v1109 = vunpack.c.l.b16 %v398
      %v1110 = vunpack.c.l.b16 %v399
      %v1111 = vunpack.c.l.b16 %v400
      %v1112 = vunpack.c.l.b16 %v401
      %v1113 = vunpack.c.l.b16 %v402
      %v1114 = vunpack.c.l.b16 %v403
      %v1115 = vunpack.c.l.b16 %v404
      %v1116 = vunpack.c.l.b16 %v405
      %v1117 = vunpack.c.l.b16 %v406
      %v1118 = vunpack.c.l.b16 %v407
      %v1119 = vunpack.c.l.b16 %v408
      %v1120 = vunpack.c.l.b16 %v409
      %v1121 = vunpack.c.l.b16 %v410
      %v1122 = vunpack.c.l.b16 %v411
      %v1123 = vunpack.c.l.b16 %v412
      %v1124 = vunpack.c.l.b16 %v413
      %v1125 = vunpack.c.l.b16 %v414
      %v1126 = vunpack.c.l.b16 %v415
      %v1127 = vunpack.c.l.b16 %v416
      %v1128 = vunpack.c.l.b16 %v417
      %v1129 = vunpack.c.l.b16 %v418
      %v1130 = vunpack.c.l.b16 %v419
      %v1131 = vunpack.c.l.b16 %v420
      %v1132 = vunpack.c.l.b16 %v421
      %v1133 = vunpack.c.l.b16 %v422
      %v1134 = vunpack.c.l.b16 %v423
      %v1135 = vunpack.c.l.b16 %v424
      %v1136 = vunpack.c.l.b16 %v425
      %v1137 = vunpack.c.l.b16 %v426
      %v1138 = vunpack.c.l.b16 %v427
      %v1139 = vpack.c.b16 %v1108, %v1107
      %v1140 = vpack.c.b16 %v1110, %v1109
      %v1141 = vpack.c.b16 %v1112, %v1111
      %v1142 = vpack.c.b16 %v1114, %v1113
      %v1143 = vpack.c.b16 %v1116, %v1115
      %v1144 = vpack.c.b16 %v1118, %v1117
      %v1145 = vpack.c.b16 %v1120, %v1119
      %v1146 = vpack.c.b16 %v1122, %v1121
      %v1147 = vpack.c.b16 %v1124, %v1123
      %v1148 = vpack.c.b16 %v1126, %v1125
      %v1149 = vpack.c.b16 %v1128, %v1127
      %v1150 = vpack.c.b16 %v1130, %v1129
      %v1151 = vpack.c.b16 %v1132, %v1131
      %v1152 = vpack.c.b16 %v1134, %v1133
      %v1153 = vpack.c.b16 %v1136, %v1135
      %v1154 = vpack.c.b16 %v1138, %v1137
      %1171 = vmatprep.subr.bf16.mxu0 0
      %1172 = vmatpush1.bf16.msra.mxu0 %v1139
      %1173 = vmatprep.subr.bf16.mxu0 0
      %1174 = vmatpush1.bf16.msra.mxu0 %v1140
      %1175 = vmatprep.subr.bf16.mxu0 0
      %1176 = vmatpush1.bf16.msra.mxu0 %v1141
      %1177 = vmatprep.subr.bf16.mxu0 0
      %1178 = vmatpush1.bf16.msra.mxu0 %v1142
      %1179 = vmatprep.subr.bf16.mxu0 0
      %1180 = vmatpush1.bf16.msra.mxu0 %v1143
      %1181 = vmatprep.subr.bf16.mxu0 0
      %1182 = vmatpush1.bf16.msra.mxu0 %v1144
      %1183 = vmatprep.subr.bf16.mxu0 0
      %1184 = vmatpush1.bf16.msra.mxu0 %v1145
      %1185 = vmatprep.subr.bf16.mxu0 0
      %1186 = vmatpush1.bf16.msra.mxu0 %v1146
      %1187 = vmatprep.subr.bf16.mxu0 0
      %1188 = vmatpush1.bf16.msra.mxu0 %v1147
      %1189 = vmatprep.subr.bf16.mxu0 0
      %1190 = vmatpush1.bf16.msra.mxu0 %v1148
      %1191 = vmatprep.subr.bf16.mxu0 0
      %1192 = vmatpush1.bf16.msra.mxu0 %v1149
      %1193 = vmatprep.subr.bf16.mxu0 0
      %1194 = vmatpush1.bf16.msra.mxu0 %v1150
      %1195 = vmatprep.subr.bf16.mxu0 0
      %1196 = vmatpush1.bf16.msra.mxu0 %v1151
      %1197 = vmatprep.subr.bf16.mxu0 0
      %1198 = vmatpush1.bf16.msra.mxu0 %v1152
      %1199 = vmatprep.subr.bf16.mxu0 0
      %1200 = vmatpush1.bf16.msra.mxu0 %v1153
      %1201 = vmatprep.subr.bf16.mxu0 0
      %1202 = vmatpush1.bf16.msra.mxu0 %v1154
      %1203 = vmatprep.mubr.bf16.mxu0 %v820
      %1204 = vmatmul.mubr.bf16.gmra.mrb[0].mxu0 %v819
      %v1205 = vpop.f32.mrb[0].mxu0
      %v1206 = vadd.f32 %v433, %v1205
      %v1207 = vpop.f32.mrb[0].mxu0
      %v1208 = vpop.f32.mrb[0].mxu0
      %v1209 = vadd.f32 %v433, %v1208
      %v1210 = vpop.f32.mrb[0].mxu0
      %1211 = vmatprep.mubr.bf16.mxu0 %v822
      %1212 = vmatmul.mubr.bf16.gmra.mrb[0].mxu0 %v821
      %v1213 = vpop.f32.mrb[0].mxu0
      %v1214 = vadd.f32 %v433, %v1213
      %v1215 = vpop.f32.mrb[0].mxu0
      %v1216 = vpop.f32.mrb[0].mxu0
      %v1217 = vadd.f32 %v433, %v1216
      %v1218 = vpop.f32.mrb[0].mxu0
      %1219 = vmatprep.mubr.bf16.mxu0 %v824
      %1220 = vmatmul.mubr.bf16.gmra.mrb[0].mxu0 %v823
      %v1221 = vpop.f32.mrb[0].mxu0
      %v1222 = vadd.f32 %v433, %v1221
      %v1223 = vpop.f32.mrb[0].mxu0
      %v1224 = vpop.f32.mrb[0].mxu0
      %v1225 = vadd.f32 %v433, %v1224
      %v1226 = vpop.f32.mrb[0].mxu0
      %1227 = vmatprep.mubr.bf16.mxu0 %v826
      %1228 = vmatmul.mubr.bf16.gmra.mrb[0].mxu0 %v825
      %v1229 = vpop.f32.mrb[0].mxu0
      %v1230 = vadd.f32 %v433, %v1229
      %v1231 = vpop.f32.mrb[0].mxu0
      %v1232 = vpop.f32.mrb[0].mxu0
      %v1233 = vadd.f32 %v433, %v1232
      %v1234 = vpop.f32.mrb[0].mxu0
      %1235 = vmatprep.mubr.bf16.mxu0 %v828
      %1236 = vmatmul.mubr.bf16.gmra.mrb[0].mxu0 %v827
      %v1237 = vpop.f32.mrb[0].mxu0
      %v1238 = vadd.f32 %v433, %v1237
      %v1239 = vpop.f32.mrb[0].mxu0
      %v1240 = vpop.f32.mrb[0].mxu0
      %v1241 = vadd.f32 %v433, %v1240
      %v1242 = vpop.f32.mrb[0].mxu0
      %1243 = vmatprep.mubr.bf16.mxu0 %v830
      %1244 = vmatmul.mubr.bf16.gmra.mrb[0].mxu0 %v829
      %v1245 = vpop.f32.mrb[0].mxu0
      %v1246 = vadd.f32 %v433, %v1245
      %v1247 = vpop.f32.mrb[0].mxu0
      %v1248 = vpop.f32.mrb[0].mxu0
      %v1249 = vadd.f32 %v433, %v1248
      %v1250 = vpop.f32.mrb[0].mxu0
      %1251 = vmatprep.mubr.bf16.mxu0 %v832
      %1252 = vmatmul.mubr.bf16.gmra.mrb[0].mxu0 %v831
      %v1253 = vpop.f32.mrb[0].mxu0
      %v1254 = vadd.f32 %v433, %v1253
      %v1255 = vpop.f32.mrb[0].mxu0
      %v1256 = vpop.f32.mrb[0].mxu0
      %v1257 = vadd.f32 %v433, %v1256
      %v1258 = vpop.f32.mrb[0].mxu0
      %1259 = vmatprep.mubr.bf16.mxu0 %v834
      %1260 = vmatmul.mubr.bf16.gmra.mrb[0].mxu0 %v833
      %v1261 = vpop.f32.mrb[0].mxu0
      %v1262 = vadd.f32 %v433, %v1261
      %v1263 = vpop.f32.mrb[0].mxu0
      %v1264 = vpop.f32.mrb[0].mxu0
      %v1265 = vadd.f32 %v433, %v1264
      %v1266 = vpop.f32.mrb[0].mxu0
      %1267 = vmatprep.mubr.bf16.mxu0 %v836
      %1268 = vmatmul.mubr.bf16.gmra.mrb[0].mxu0 %v835
      %v1269 = vpop.f32.mrb[0].mxu0
      %v1270 = vadd.f32 %v433, %v1269
      %v1271 = vpop.f32.mrb[0].mxu0
      %v1272 = vpop.f32.mrb[0].mxu0
      %v1273 = vadd.f32 %v433, %v1272
      %v1274 = vpop.f32.mrb[0].mxu0
      %1275 = vmatprep.mubr.bf16.mxu0 %v838
      %1276 = vmatmul.mubr.bf16.gmra.mrb[0].mxu0 %v837
      %v1277 = vpop.f32.mrb[0].mxu0
      %v1278 = vadd.f32 %v433, %v1277
      %v1279 = vpop.f32.mrb[0].mxu0
      %v1280 = vpop.f32.mrb[0].mxu0
      %v1281 = vadd.f32 %v433, %v1280
      %v1282 = vpop.f32.mrb[0].mxu0
      %1283 = vmatprep.mubr.bf16.mxu0 %v840
      %1284 = vmatmul.mubr.bf16.gmra.mrb[0].mxu0 %v839
      %v1285 = vpop.f32.mrb[0].mxu0
      %v1286 = vadd.f32 %v433, %v1285
      %v1287 = vpop.f32.mrb[0].mxu0
      %v1288 = vpop.f32.mrb[0].mxu0
      %v1289 = vadd.f32 %v433, %v1288
      %v1290 = vpop.f32.mrb[0].mxu0
      %1291 = vmatprep.mubr.bf16.mxu0 %v842
      %1292 = vmatmul.mubr.bf16.gmra.mrb[0].mxu0 %v841
      %v1293 = vpop.f32.mrb[0].mxu0
      %v1294 = vadd.f32 %v433, %v1293
      %v1295 = vpop.f32.mrb[0].mxu0
      %v1296 = vpop.f32.mrb[0].mxu0
      %v1297 = vadd.f32 %v433, %v1296
      %v1298 = vpop.f32.mrb[0].mxu0
      %1299 = vmatprep.mubr.bf16.mxu0 %v844
      %1300 = vmatmul.mubr.bf16.gmra.mrb[0].mxu0 %v843
      %v1301 = vpop.f32.mrb[0].mxu0
      %v1302 = vadd.f32 %v433, %v1301
      %v1303 = vpop.f32.mrb[0].mxu0
      %v1304 = vpop.f32.mrb[0].mxu0
      %v1305 = vadd.f32 %v433, %v1304
      %v1306 = vpop.f32.mrb[0].mxu0
      %1307 = vmatprep.mubr.bf16.mxu0 %v846
      %1308 = vmatmul.mubr.bf16.gmra.mrb[0].mxu0 %v845
      %v1309 = vpop.f32.mrb[0].mxu0
      %v1310 = vadd.f32 %v433, %v1309
      %v1311 = vpop.f32.mrb[0].mxu0
      %v1312 = vpop.f32.mrb[0].mxu0
      %v1313 = vadd.f32 %v433, %v1312
      %v1314 = vpop.f32.mrb[0].mxu0
      %1315 = vmatprep.mubr.bf16.mxu0 %v848
      %1316 = vmatmul.mubr.bf16.gmra.mrb[0].mxu0 %v847
      %v1317 = vpop.f32.mrb[0].mxu0
      %v1318 = vadd.f32 %v433, %v1317
      %v1319 = vpop.f32.mrb[0].mxu0
      %v1320 = vpop.f32.mrb[0].mxu0
      %v1321 = vadd.f32 %v433, %v1320
      %v1322 = vpop.f32.mrb[0].mxu0
      %1323 = vmatprep.mubr.bf16.mxu0 %v850
      %1324 = vmatmul.mubr.bf16.gmra.mrb[0].mxu0 %v849
      %v1325 = vpop.f32.mrb[0].mxu0
      %v1326 = vadd.f32 %v433, %v1325
      %v1327 = vpop.f32.mrb[0].mxu0
      %v1328 = vpop.f32.mrb[0].mxu0
      %v1329 = vadd.f32 %v433, %v1328
      %v1330 = vpop.f32.mrb[0].mxu0
      %1331 = vmatprep.mubr.bf16.mxu0 %v852
      %1332 = vmatmul.mubr.bf16.gmra.mrb[0].mxu0 %v851
      %v1333 = vpop.f32.mrb[0].mxu0
      %v1334 = vadd.f32 %v433, %v1333
      %v1335 = vpop.f32.mrb[0].mxu0
      %v1336 = vpop.f32.mrb[0].mxu0
      %v1337 = vadd.f32 %v433, %v1336
      %v1338 = vpop.f32.mrb[0].mxu0
      %1339 = vmatprep.mubr.bf16.mxu0 %v854
      %1340 = vmatmul.mubr.bf16.gmra.mrb[0].mxu0 %v853
      %v1341 = vpop.f32.mrb[0].mxu0
      %v1342 = vadd.f32 %v433, %v1341
      %v1343 = vpop.f32.mrb[0].mxu0
      %v1344 = vpop.f32.mrb[0].mxu0
      %v1345 = vadd.f32 %v433, %v1344
      %v1346 = vpop.f32.mrb[0].mxu0
      %1347 = vmatprep.mubr.bf16.mxu0 %v856
      %1348 = vmatmul.mubr.bf16.gmra.mrb[0].mxu0 %v855
      %v1349 = vpop.f32.mrb[0].mxu0
      %v1350 = vadd.f32 %v433, %v1349
      %v1351 = vpop.f32.mrb[0].mxu0
      %v1352 = vpop.f32.mrb[0].mxu0
      %v1353 = vadd.f32 %v433, %v1352
      %v1354 = vpop.f32.mrb[0].mxu0
      %1355 = vmatprep.mubr.bf16.mxu0 %v858
      %1356 = vmatmul.mubr.bf16.gmra.mrb[0].mxu0 %v857
      %v1357 = vpop.f32.mrb[0].mxu0
      %v1358 = vadd.f32 %v433, %v1357
      %v1359 = vpop.f32.mrb[0].mxu0
      %v1360 = vpop.f32.mrb[0].mxu0
      %v1361 = vadd.f32 %v433, %v1360
      %v1362 = vpop.f32.mrb[0].mxu0
      %1363 = vmatprep.mubr.bf16.mxu0 %v860
      %1364 = vmatmul.mubr.bf16.gmra.mrb[0].mxu0 %v859
      %v1365 = vpop.f32.mrb[0].mxu0
      %v1366 = vadd.f32 %v433, %v1365
      %v1367 = vpop.f32.mrb[0].mxu0
      %v1368 = vpop.f32.mrb[0].mxu0
      %v1369 = vadd.f32 %v433, %v1368
      %v1370 = vpop.f32.mrb[0].mxu0
      %1371 = vmatprep.mubr.bf16.mxu0 %v862
      %1372 = vmatmul.mubr.bf16.gmra.mrb[0].mxu0 %v861
      %v1373 = vpop.f32.mrb[0].mxu0
      %v1374 = vadd.f32 %v433, %v1373
      %v1375 = vpop.f32.mrb[0].mxu0
      %v1376 = vpop.f32.mrb[0].mxu0
      %v1377 = vadd.f32 %v433, %v1376
      %v1378 = vpop.f32.mrb[0].mxu0
      %1379 = vmatprep.mubr.bf16.mxu0 %v864
      %1380 = vmatmul.mubr.bf16.gmra.mrb[0].mxu0 %v863
      %v1381 = vpop.f32.mrb[0].mxu0
      %v1382 = vadd.f32 %v433, %v1381
      %v1383 = vpop.f32.mrb[0].mxu0
      %v1384 = vpop.f32.mrb[0].mxu0
      %v1385 = vadd.f32 %v433, %v1384
      %v1386 = vpop.f32.mrb[0].mxu0
      %1387 = vmatprep.mubr.bf16.mxu0 %v866
      %1388 = vmatmul.mubr.bf16.gmra.mrb[0].mxu0 %v865
      %v1389 = vpop.f32.mrb[0].mxu0
      %v1390 = vadd.f32 %v433, %v1389
      %v1391 = vpop.f32.mrb[0].mxu0
      %v1392 = vpop.f32.mrb[0].mxu0
      %v1393 = vadd.f32 %v433, %v1392
      %v1394 = vpop.f32.mrb[0].mxu0
      %1395 = vmatprep.mubr.bf16.mxu0 %v868
      %1396 = vmatmul.mubr.bf16.gmra.mrb[0].mxu0 %v867
      %v1397 = vpop.f32.mrb[0].mxu0
      %v1398 = vadd.f32 %v433, %v1397
      %v1399 = vpop.f32.mrb[0].mxu0
      %v1400 = vpop.f32.mrb[0].mxu0
      %v1401 = vadd.f32 %v433, %v1400
      %v1402 = vpop.f32.mrb[0].mxu0
      %1403 = vmatprep.mubr.bf16.mxu0 %v870
      %1404 = vmatmul.mubr.bf16.gmra.mrb[0].mxu0 %v869
      %v1405 = vpop.f32.mrb[0].mxu0
      %v1406 = vadd.f32 %v433, %v1405
      %v1407 = vpop.f32.mrb[0].mxu0
      %v1408 = vpop.f32.mrb[0].mxu0
      %v1409 = vadd.f32 %v433, %v1408
      %v1410 = vpop.f32.mrb[0].mxu0
      %1411 = vmatprep.mubr.bf16.mxu0 %v872
      %1412 = vmatmul.mubr.bf16.gmra.mrb[0].mxu0 %v871
      %v1413 = vpop.f32.mrb[0].mxu0
      %v1414 = vadd.f32 %v433, %v1413
      %v1415 = vpop.f32.mrb[0].mxu0
      %v1416 = vpop.f32.mrb[0].mxu0
      %v1417 = vadd.f32 %v433, %v1416
      %v1418 = vpop.f32.mrb[0].mxu0
      %1419 = vmatprep.mubr.bf16.mxu0 %v874
      %1420 = vmatmul.mubr.bf16.gmra.mrb[0].mxu0 %v873
      %v1421 = vpop.f32.mrb[0].mxu0
      %v1422 = vadd.f32 %v433, %v1421
      %v1423 = vpop.f32.mrb[0].mxu0
      %v1424 = vpop.f32.mrb[0].mxu0
      %v1425 = vadd.f32 %v433, %v1424
      %v1426 = vpop.f32.mrb[0].mxu0
      %1427 = vmatprep.mubr.bf16.mxu0 %v876
      %1428 = vmatmul.mubr.bf16.gmra.mrb[0].mxu0 %v875
      %v1429 = vpop.f32.mrb[0].mxu0
      %v1430 = vadd.f32 %v433, %v1429
      %v1431 = vpop.f32.mrb[0].mxu0
      %v1432 = vpop.f32.mrb[0].mxu0
      %v1433 = vadd.f32 %v433, %v1432
      %v1434 = vpop.f32.mrb[0].mxu0
      %1435 = vmatprep.mubr.bf16.mxu0 %v878
      %1436 = vmatmul.mubr.bf16.gmra.mrb[0].mxu0 %v877
      %v1437 = vpop.f32.mrb[0].mxu0
      %v1438 = vadd.f32 %v433, %v1437
      %v1439 = vpop.f32.mrb[0].mxu0
      %v1440 = vpop.f32.mrb[0].mxu0
      %v1441 = vadd.f32 %v433, %v1440
      %v1442 = vpop.f32.mrb[0].mxu0
      %1443 = vmatprep.mubr.bf16.mxu0 %v880
      %1444 = vmatmul.mubr.bf16.gmra.mrb[0].mxu0 %v879
      %v1445 = vpop.f32.mrb[0].mxu0
      %v1446 = vadd.f32 %v433, %v1445
      %v1447 = vpop.f32.mrb[0].mxu0
      %v1448 = vpop.f32.mrb[0].mxu0
      %v1449 = vadd.f32 %v433, %v1448
      %v1450 = vpop.f32.mrb[0].mxu0
      %1451 = vmatprep.mubr.bf16.mxu0 %v882
      %1452 = vmatmul.mubr.bf16.gmra.mrb[0].mxu0 %v881
      %v1453 = vpop.f32.mrb[0].mxu0
      %v1454 = vadd.f32 %v433, %v1453
      %v1455 = vpop.f32.mrb[0].mxu0
      %v1456 = vpop.f32.mrb[0].mxu0
      %v1457 = vadd.f32 %v433, %v1456
      %v1458 = vpop.f32.mrb[0].mxu0
      %1459 = vmatprep.mubr.bf16.mxu0 %v884
      %1460 = vmatmul.mubr.bf16.gmra.mrb[0].mxu0 %v883
      %v1461 = vpop.f32.mrb[0].mxu0
      %v1462 = vadd.f32 %v433, %v1461
      %v1463 = vpop.f32.mrb[0].mxu0
      %v1464 = vpop.f32.mrb[0].mxu0
      %v1465 = vadd.f32 %v433, %v1464
      %v1466 = vpop.f32.mrb[0].mxu0
      %1467 = vmatprep.mubr.bf16.mxu0 %v886
      %1468 = vmatmul.mubr.bf16.gmra.mrb[0].mxu0 %v885
      %v1469 = vpop.f32.mrb[0].mxu0
      %v1470 = vadd.f32 %v433, %v1469
      %v1471 = vpop.f32.mrb[0].mxu0
      %v1472 = vpop.f32.mrb[0].mxu0
      %v1473 = vadd.f32 %v433, %v1472
      %v1474 = vpop.f32.mrb[0].mxu0
      %1475 = vmatprep.mubr.bf16.mxu0 %v888
      %1476 = vmatmul.mubr.bf16.gmra.mrb[0].mxu0 %v887
      %v1477 = vpop.f32.mrb[0].mxu0
      %v1478 = vadd.f32 %v433, %v1477
      %v1479 = vpop.f32.mrb[0].mxu0
      %v1480 = vpop.f32.mrb[0].mxu0
      %v1481 = vadd.f32 %v433, %v1480
      %v1482 = vpop.f32.mrb[0].mxu0
      %1483 = vmatprep.mubr.bf16.mxu0 %v890
      %1484 = vmatmul.mubr.bf16.gmra.mrb[0].mxu0 %v889
      %v1485 = vpop.f32.mrb[0].mxu0
      %v1486 = vadd.f32 %v433, %v1485
      %v1487 = vpop.f32.mrb[0].mxu0
      %v1488 = vpop.f32.mrb[0].mxu0
      %v1489 = vadd.f32 %v433, %v1488
      %v1490 = vpop.f32.mrb[0].mxu0
      %1491 = vmatprep.mubr.bf16.mxu0 %v892
      %1492 = vmatmul.mubr.bf16.gmra.mrb[0].mxu0 %v891
      %v1493 = vpop.f32.mrb[0].mxu0
      %v1494 = vadd.f32 %v433, %v1493
      %v1495 = vpop.f32.mrb[0].mxu0
      %v1496 = vpop.f32.mrb[0].mxu0
      %v1497 = vadd.f32 %v433, %v1496
      %v1498 = vpop.f32.mrb[0].mxu0
      %1499 = vmatprep.mubr.bf16.mxu0 %v894
      %1500 = vmatmul.mubr.bf16.gmra.mrb[0].mxu0 %v893
      %v1501 = vpop.f32.mrb[0].mxu0
      %v1502 = vadd.f32 %v433, %v1501
      %v1503 = vpop.f32.mrb[0].mxu0
      %v1504 = vpop.f32.mrb[0].mxu0
      %v1505 = vadd.f32 %v433, %v1504
      %v1506 = vpop.f32.mrb[0].mxu0
      %1507 = vmatprep.mubr.bf16.mxu0 %v896
      %1508 = vmatmul.mubr.bf16.gmra.mrb[0].mxu0 %v895
      %v1509 = vpop.f32.mrb[0].mxu0
      %v1510 = vadd.f32 %v433, %v1509
      %v1511 = vpop.f32.mrb[0].mxu0
      %v1512 = vpop.f32.mrb[0].mxu0
      %v1513 = vadd.f32 %v433, %v1512
      %v1514 = vpop.f32.mrb[0].mxu0
      %1515 = vmatprep.mubr.bf16.mxu0 %v898
      %1516 = vmatmul.mubr.bf16.gmra.mrb[0].mxu0 %v897
      %v1517 = vpop.f32.mrb[0].mxu0
      %v1518 = vadd.f32 %v433, %v1517
      %v1519 = vpop.f32.mrb[0].mxu0
      %v1520 = vpop.f32.mrb[0].mxu0
      %v1521 = vadd.f32 %v433, %v1520
      %v1522 = vpop.f32.mrb[0].mxu0
      %1523 = vmatprep.mubr.bf16.mxu0 %v900
      %1524 = vmatmul.mubr.bf16.gmra.mrb[0].mxu0 %v899
      %v1525 = vpop.f32.mrb[0].mxu0
      %v1526 = vadd.f32 %v433, %v1525
      %v1527 = vpop.f32.mrb[0].mxu0
      %v1528 = vpop.f32.mrb[0].mxu0
      %v1529 = vadd.f32 %v433, %v1528
      %v1530 = vpop.f32.mrb[0].mxu0
      %1531 = vmatprep.mubr.bf16.mxu0 %v902
      %1532 = vmatmul.mubr.bf16.gmra.mrb[0].mxu0 %v901
      %v1533 = vpop.f32.mrb[0].mxu0
      %v1534 = vadd.f32 %v433, %v1533
      %v1535 = vpop.f32.mrb[0].mxu0
      %v1536 = vpop.f32.mrb[0].mxu0
      %v1537 = vadd.f32 %v433, %v1536
      %v1538 = vpop.f32.mrb[0].mxu0
      %1539 = vmatprep.mubr.bf16.mxu0 %v904
      %1540 = vmatmul.mubr.bf16.gmra.mrb[0].mxu0 %v903
      %v1541 = vpop.f32.mrb[0].mxu0
      %v1542 = vadd.f32 %v433, %v1541
      %v1543 = vpop.f32.mrb[0].mxu0
      %v1544 = vpop.f32.mrb[0].mxu0
      %v1545 = vadd.f32 %v433, %v1544
      %v1546 = vpop.f32.mrb[0].mxu0
      %1547 = vmatprep.mubr.bf16.mxu0 %v906
      %1548 = vmatmul.mubr.bf16.gmra.mrb[0].mxu0 %v905
      %v1549 = vpop.f32.mrb[0].mxu0
      %v1550 = vadd.f32 %v433, %v1549
      %v1551 = vpop.f32.mrb[0].mxu0
      %v1552 = vpop.f32.mrb[0].mxu0
      %v1553 = vadd.f32 %v433, %v1552
      %v1554 = vpop.f32.mrb[0].mxu0
      %1555 = vmatprep.mubr.bf16.mxu0 %v908
      %1556 = vmatmul.mubr.bf16.gmra.mrb[0].mxu0 %v907
      %v1557 = vpop.f32.mrb[0].mxu0
      %v1558 = vadd.f32 %v433, %v1557
      %v1559 = vpop.f32.mrb[0].mxu0
      %v1560 = vpop.f32.mrb[0].mxu0
      %v1561 = vadd.f32 %v433, %v1560
      %v1562 = vpop.f32.mrb[0].mxu0
      %1563 = vmatprep.mubr.bf16.mxu0 %v910
      %1564 = vmatmul.mubr.bf16.gmra.mrb[0].mxu0 %v909
      %v1565 = vpop.f32.mrb[0].mxu0
      %v1566 = vadd.f32 %v433, %v1565
      %v1567 = vpop.f32.mrb[0].mxu0
      %v1568 = vpop.f32.mrb[0].mxu0
      %v1569 = vadd.f32 %v433, %v1568
      %v1570 = vpop.f32.mrb[0].mxu0
      %1571 = vmatprep.mubr.bf16.mxu0 %v912
      %1572 = vmatmul.mubr.bf16.gmra.mrb[0].mxu0 %v911
      %v1573 = vpop.f32.mrb[0].mxu0
      %v1574 = vadd.f32 %v433, %v1573
      %v1575 = vpop.f32.mrb[0].mxu0
      %v1576 = vpop.f32.mrb[0].mxu0
      %v1577 = vadd.f32 %v433, %v1576
      %v1578 = vpop.f32.mrb[0].mxu0
      %1579 = vmatprep.mubr.bf16.mxu0 %v914
      %1580 = vmatmul.mubr.bf16.gmra.mrb[0].mxu0 %v913
      %v1581 = vpop.f32.mrb[0].mxu0
      %v1582 = vadd.f32 %v433, %v1581
      %v1583 = vpop.f32.mrb[0].mxu0
      %v1584 = vpop.f32.mrb[0].mxu0
      %v1585 = vadd.f32 %v433, %v1584
      %v1586 = vpop.f32.mrb[0].mxu0
      %1587 = vmatprep.mubr.bf16.mxu0 %v916
      %1588 = vmatmul.mubr.bf16.gmra.mrb[0].mxu0 %v915
      %v1589 = vpop.f32.mrb[0].mxu0
      %v1590 = vadd.f32 %v433, %v1589
      %v1591 = vpop.f32.mrb[0].mxu0
      %v1592 = vpop.f32.mrb[0].mxu0
      %v1593 = vadd.f32 %v433, %v1592
      %v1594 = vpop.f32.mrb[0].mxu0
      %1595 = vmatprep.mubr.bf16.mxu0 %v918
      %1596 = vmatmul.mubr.bf16.gmra.mrb[0].mxu0 %v917
      %v1597 = vpop.f32.mrb[0].mxu0
      %v1598 = vadd.f32 %v433, %v1597
      %v1599 = vpop.f32.mrb[0].mxu0
      %v1600 = vpop.f32.mrb[0].mxu0
      %v1601 = vadd.f32 %v433, %v1600
      %v1602 = vpop.f32.mrb[0].mxu0
      %1603 = vmatprep.mubr.bf16.mxu0 %v920
      %1604 = vmatmul.mubr.bf16.gmra.mrb[0].mxu0 %v919
      %v1605 = vpop.f32.mrb[0].mxu0
      %v1606 = vadd.f32 %v433, %v1605
      %v1607 = vpop.f32.mrb[0].mxu0
      %v1608 = vpop.f32.mrb[0].mxu0
      %v1609 = vadd.f32 %v433, %v1608
      %v1610 = vpop.f32.mrb[0].mxu0
      %1611 = vmatprep.mubr.bf16.mxu0 %v922
      %1612 = vmatmul.mubr.bf16.gmra.mrb[0].mxu0 %v921
      %v1613 = vpop.f32.mrb[0].mxu0
      %v1614 = vadd.f32 %v433, %v1613
      %v1615 = vpop.f32.mrb[0].mxu0
      %v1616 = vpop.f32.mrb[0].mxu0
      %v1617 = vadd.f32 %v433, %v1616
      %v1618 = vpop.f32.mrb[0].mxu0
      %1619 = vmatprep.mubr.bf16.mxu0 %v924
      %1620 = vmatmul.mubr.bf16.gmra.mrb[0].mxu0 %v923
      %v1621 = vpop.f32.mrb[0].mxu0
      %v1622 = vadd.f32 %v433, %v1621
      %v1623 = vpop.f32.mrb[0].mxu0
      %v1624 = vpop.f32.mrb[0].mxu0
      %v1625 = vadd.f32 %v433, %v1624
      %v1626 = vpop.f32.mrb[0].mxu0
      %1627 = vmatprep.mubr.bf16.mxu0 %v926
      %1628 = vmatmul.mubr.bf16.gmra.mrb[0].mxu0 %v925
      %v1629 = vpop.f32.mrb[0].mxu0
      %v1630 = vadd.f32 %v433, %v1629
      %v1631 = vpop.f32.mrb[0].mxu0
      %v1632 = vpop.f32.mrb[0].mxu0
      %v1633 = vadd.f32 %v433, %v1632
      %v1634 = vpop.f32.mrb[0].mxu0
      %1635 = vmatprep.mubr.bf16.mxu0 %v928
      %1636 = vmatmul.mubr.bf16.gmra.mrb[0].mxu0 %v927
      %v1637 = vpop.f32.mrb[0].mxu0
      %v1638 = vadd.f32 %v433, %v1637
      %v1639 = vpop.f32.mrb[0].mxu0
      %v1640 = vpop.f32.mrb[0].mxu0
      %v1641 = vadd.f32 %v433, %v1640
      %v1642 = vpop.f32.mrb[0].mxu0
      %1643 = vmatprep.mubr.bf16.mxu0 %v930
      %1644 = vmatmul.mubr.bf16.gmra.mrb[0].mxu0 %v929
      %v1645 = vpop.f32.mrb[0].mxu0
      %v1646 = vadd.f32 %v433, %v1645
      %v1647 = vpop.f32.mrb[0].mxu0
      %v1648 = vpop.f32.mrb[0].mxu0
      %v1649 = vadd.f32 %v433, %v1648
      %v1650 = vpop.f32.mrb[0].mxu0
      %1651 = vmatprep.mubr.bf16.mxu0 %v932
      %1652 = vmatmul.mubr.bf16.gmra.mrb[0].mxu0 %v931
      %v1653 = vpop.f32.mrb[0].mxu0
      %v1654 = vadd.f32 %v433, %v1653
      %v1655 = vpop.f32.mrb[0].mxu0
      %v1656 = vpop.f32.mrb[0].mxu0
      %v1657 = vadd.f32 %v433, %v1656
      %v1658 = vpop.f32.mrb[0].mxu0
      %1659 = vmatprep.mubr.bf16.mxu0 %v934
      %1660 = vmatmul.mubr.bf16.gmra.mrb[0].mxu0 %v933
      %v1661 = vpop.f32.mrb[0].mxu0
      %v1662 = vadd.f32 %v433, %v1661
      %v1663 = vpop.f32.mrb[0].mxu0
      %v1664 = vpop.f32.mrb[0].mxu0
      %v1665 = vadd.f32 %v433, %v1664
      %v1666 = vpop.f32.mrb[0].mxu0
      %1667 = vmatprep.mubr.bf16.mxu0 %v936
      %1668 = vmatmul.mubr.bf16.gmra.mrb[0].mxu0 %v935
      %v1669 = vpop.f32.mrb[0].mxu0
      %v1670 = vadd.f32 %v433, %v1669
      %v1671 = vpop.f32.mrb[0].mxu0
      %v1672 = vpop.f32.mrb[0].mxu0
      %v1673 = vadd.f32 %v433, %v1672
      %v1674 = vpop.f32.mrb[0].mxu0
      %1675 = vmatprep.mubr.bf16.mxu0 %v938
      %1676 = vmatmul.mubr.bf16.gmra.mrb[0].mxu0 %v937
      %v1677 = vpop.f32.mrb[0].mxu0
      %v1678 = vadd.f32 %v433, %v1677
      %v1679 = vpop.f32.mrb[0].mxu0
      %v1680 = vpop.f32.mrb[0].mxu0
      %v1681 = vadd.f32 %v433, %v1680
      %v1682 = vpop.f32.mrb[0].mxu0
      %1683 = vmatprep.mubr.bf16.mxu0 %v940
      %1684 = vmatmul.mubr.bf16.gmra.mrb[0].mxu0 %v939
      %v1685 = vpop.f32.mrb[0].mxu0
      %v1686 = vadd.f32 %v433, %v1685
      %v1687 = vpop.f32.mrb[0].mxu0
      %v1688 = vpop.f32.mrb[0].mxu0
      %v1689 = vadd.f32 %v433, %v1688
      %v1690 = vpop.f32.mrb[0].mxu0
      %1691 = vmatprep.mubr.bf16.mxu0 %v942
      %1692 = vmatmul.mubr.bf16.gmra.mrb[0].mxu0 %v941
      %v1693 = vpop.f32.mrb[0].mxu0
      %v1694 = vadd.f32 %v433, %v1693
      %v1695 = vpop.f32.mrb[0].mxu0
      %v1696 = vpop.f32.mrb[0].mxu0
      %v1697 = vadd.f32 %v433, %v1696
      %v1698 = vpop.f32.mrb[0].mxu0
      %1699 = vmatprep.mubr.bf16.mxu0 %v944
      %1700 = vmatmul.mubr.bf16.gmra.mrb[0].mxu0 %v943
      %v1701 = vpop.f32.mrb[0].mxu0
      %v1702 = vadd.f32 %v433, %v1701
      %v1703 = vpop.f32.mrb[0].mxu0
      %v1704 = vpop.f32.mrb[0].mxu0
      %v1705 = vadd.f32 %v433, %v1704
      %v1706 = vpop.f32.mrb[0].mxu0
      %1707 = vmatprep.mubr.bf16.mxu0 %v946
      %1708 = vmatmul.mubr.bf16.gmra.mrb[0].mxu0 %v945
      %v1709 = vpop.f32.mrb[0].mxu0
      %v1710 = vadd.f32 %v433, %v1709
      %v1711 = vpop.f32.mrb[0].mxu0
      %v1712 = vpop.f32.mrb[0].mxu0
      %v1713 = vadd.f32 %v433, %v1712
      %v1714 = vpop.f32.mrb[0].mxu0
      %1715 = vdwg.mxu0
      %v1716 = vmax.f32 %v1206, 0.0
      %v1717 = vmax.f32 %v1209, 0.0
      %v1718 = vmax.f32 %v1214, 0.0
      %v1719 = vmax.f32 %v1217, 0.0
      %v1720 = vmax.f32 %v1222, 0.0
      %v1721 = vmax.f32 %v1225, 0.0
      %v1722 = vmax.f32 %v1230, 0.0
      %v1723 = vmax.f32 %v1233, 0.0
      %v1724 = vmax.f32 %v1238, 0.0
      %v1725 = vmax.f32 %v1241, 0.0
      %v1726 = vmax.f32 %v1246, 0.0
      %v1727 = vmax.f32 %v1249, 0.0
      %v1728 = vmax.f32 %v1254, 0.0
      %v1729 = vmax.f32 %v1257, 0.0
      %v1730 = vmax.f32 %v1262, 0.0
      %v1731 = vmax.f32 %v1265, 0.0
      %v1732 = vmax.f32 %v1270, 0.0
      %v1733 = vmax.f32 %v1273, 0.0
      %v1734 = vmax.f32 %v1278, 0.0
      %v1735 = vmax.f32 %v1281, 0.0
      %v1736 = vmax.f32 %v1286, 0.0
      %v1737 = vmax.f32 %v1289, 0.0
      %v1738 = vmax.f32 %v1294, 0.0
      %v1739 = vmax.f32 %v1297, 0.0
      %v1740 = vmax.f32 %v1302, 0.0
      %v1741 = vmax.f32 %v1305, 0.0
      %v1742 = vmax.f32 %v1310, 0.0
      %v1743 = vmax.f32 %v1313, 0.0
      %v1744 = vmax.f32 %v1318, 0.0
      %v1745 = vmax.f32 %v1321, 0.0
      %v1746 = vmax.f32 %v1326, 0.0
      %v1747 = vmax.f32 %v1329, 0.0
      %v1748 = vmax.f32 %v1334, 0.0
      %v1749 = vmax.f32 %v1337, 0.0
      %v1750 = vmax.f32 %v1342, 0.0
      %v1751 = vmax.f32 %v1345, 0.0
      %v1752 = vmax.f32 %v1350, 0.0
      %v1753 = vmax.f32 %v1353, 0.0
      %v1754 = vmax.f32 %v1358, 0.0
      %v1755 = vmax.f32 %v1361, 0.0
      %v1756 = vmax.f32 %v1366, 0.0
      %v1757 = vmax.f32 %v1369, 0.0
      %v1758 = vmax.f32 %v1374, 0.0
      %v1759 = vmax.f32 %v1377, 0.0
      %v1760 = vmax.f32 %v1382, 0.0
      %v1761 = vmax.f32 %v1385, 0.0
      %v1762 = vmax.f32 %v1390, 0.0
      %v1763 = vmax.f32 %v1393, 0.0
      %v1764 = vmax.f32 %v1398, 0.0
      %v1765 = vmax.f32 %v1401, 0.0
      %v1766 = vmax.f32 %v1406, 0.0
      %v1767 = vmax.f32 %v1409, 0.0
      %v1768 = vmax.f32 %v1414, 0.0
      %v1769 = vmax.f32 %v1417, 0.0
      %v1770 = vmax.f32 %v1422, 0.0
      %v1771 = vmax.f32 %v1425, 0.0
      %v1772 = vmax.f32 %v1430, 0.0
      %v1773 = vmax.f32 %v1433, 0.0
      %v1774 = vmax.f32 %v1438, 0.0
      %v1775 = vmax.f32 %v1441, 0.0
      %v1776 = vmax.f32 %v1446, 0.0
      %v1777 = vmax.f32 %v1449, 0.0
      %v1778 = vmax.f32 %v1454, 0.0
      %v1779 = vmax.f32 %v1457, 0.0
      %v1780 = vmax.f32 %v1462, 0.0
      %v1781 = vmax.f32 %v1465, 0.0
      %v1782 = vmax.f32 %v1470, 0.0
      %v1783 = vmax.f32 %v1473, 0.0
      %v1784 = vmax.f32 %v1478, 0.0
      %v1785 = vmax.f32 %v1481, 0.0
      %v1786 = vmax.f32 %v1486, 0.0
      %v1787 = vmax.f32 %v1489, 0.0
      %v1788 = vmax.f32 %v1494, 0.0
      %v1789 = vmax.f32 %v1497, 0.0
      %v1790 = vmax.f32 %v1502, 0.0
      %v1791 = vmax.f32 %v1505, 0.0
      %v1792 = vmax.f32 %v1510, 0.0
      %v1793 = vmax.f32 %v1513, 0.0
      %v1794 = vmax.f32 %v1518, 0.0
      %v1795 = vmax.f32 %v1521, 0.0
      %v1796 = vmax.f32 %v1526, 0.0
      %v1797 = vmax.f32 %v1529, 0.0
      %v1798 = vmax.f32 %v1534, 0.0
      %v1799 = vmax.f32 %v1537, 0.0
      %v1800 = vmax.f32 %v1542, 0.0
      %v1801 = vmax.f32 %v1545, 0.0
      %v1802 = vmax.f32 %v1550, 0.0
      %v1803 = vmax.f32 %v1553, 0.0
      %v1804 = vmax.f32 %v1558, 0.0
      %v1805 = vmax.f32 %v1561, 0.0
      %v1806 = vmax.f32 %v1566, 0.0
      %v1807 = vmax.f32 %v1569, 0.0
      %v1808 = vmax.f32 %v1574, 0.0
      %v1809 = vmax.f32 %v1577, 0.0
      %v1810 = vmax.f32 %v1582, 0.0
      %v1811 = vmax.f32 %v1585, 0.0
      %v1812 = vmax.f32 %v1590, 0.0
      %v1813 = vmax.f32 %v1593, 0.0
      %v1814 = vmax.f32 %v1598, 0.0
      %v1815 = vmax.f32 %v1601, 0.0
      %v1816 = vmax.f32 %v1606, 0.0
      %v1817 = vmax.f32 %v1609, 0.0
      %v1818 = vmax.f32 %v1614, 0.0
      %v1819 = vmax.f32 %v1617, 0.0
      %v1820 = vmax.f32 %v1622, 0.0
      %v1821 = vmax.f32 %v1625, 0.0
      %v1822 = vmax.f32 %v1630, 0.0
      %v1823 = vmax.f32 %v1633, 0.0
      %v1824 = vmax.f32 %v1638, 0.0
      %v1825 = vmax.f32 %v1641, 0.0
      %v1826 = vmax.f32 %v1646, 0.0
      %v1827 = vmax.f32 %v1649, 0.0
      %v1828 = vmax.f32 %v1654, 0.0
      %v1829 = vmax.f32 %v1657, 0.0
      %v1830 = vmax.f32 %v1662, 0.0
      %v1831 = vmax.f32 %v1665, 0.0
      %v1832 = vmax.f32 %v1670, 0.0
      %v1833 = vmax.f32 %v1673, 0.0
      %v1834 = vmax.f32 %v1678, 0.0
      %v1835 = vmax.f32 %v1681, 0.0
      %v1836 = vmax.f32 %v1686, 0.0
      %v1837 = vmax.f32 %v1689, 0.0
      %v1838 = vmax.f32 %v1694, 0.0
      %v1839 = vmax.f32 %v1697, 0.0
      %v1840 = vmax.f32 %v1702, 0.0
      %v1841 = vmax.f32 %v1705, 0.0
      %v1842 = vmax.f32 %v1710, 0.0
      %v1843 = vmax.f32 %v1713, 0.0
      %v1844 = vpack.c.bf16 %v1717, %v1716
      %v1845 = vpack.c.bf16 %v1719, %v1718
      %v1846 = vpack.c.bf16 %v1721, %v1720
      %v1847 = vpack.c.bf16 %v1723, %v1722
      %v1848 = vpack.c.bf16 %v1725, %v1724
      %v1849 = vpack.c.bf16 %v1727, %v1726
      %v1850 = vpack.c.bf16 %v1729, %v1728
      %v1851 = vpack.c.bf16 %v1731, %v1730
      %v1852 = vpack.c.bf16 %v1733, %v1732
      %v1853 = vpack.c.bf16 %v1735, %v1734
      %v1854 = vpack.c.bf16 %v1737, %v1736
      %v1855 = vpack.c.bf16 %v1739, %v1738
      %v1856 = vpack.c.bf16 %v1741, %v1740
      %v1857 = vpack.c.bf16 %v1743, %v1742
      %v1858 = vpack.c.bf16 %v1745, %v1744
      %v1859 = vpack.c.bf16 %v1747, %v1746
      %v1860 = vpack.c.bf16 %v1749, %v1748
      %v1861 = vpack.c.bf16 %v1751, %v1750
      %v1862 = vpack.c.bf16 %v1753, %v1752
      %v1863 = vpack.c.bf16 %v1755, %v1754
      %v1864 = vpack.c.bf16 %v1757, %v1756
      %v1865 = vpack.c.bf16 %v1759, %v1758
      %v1866 = vpack.c.bf16 %v1761, %v1760
      %v1867 = vpack.c.bf16 %v1763, %v1762
      %v1868 = vpack.c.bf16 %v1765, %v1764
      %v1869 = vpack.c.bf16 %v1767, %v1766
      %v1870 = vpack.c.bf16 %v1769, %v1768
      %v1871 = vpack.c.bf16 %v1771, %v1770
      %v1872 = vpack.c.bf16 %v1773, %v1772
      %v1873 = vpack.c.bf16 %v1775, %v1774
      %v1874 = vpack.c.bf16 %v1777, %v1776
      %v1875 = vpack.c.bf16 %v1779, %v1778
      %v1876 = vpack.c.bf16 %v1781, %v1780
      %v1877 = vpack.c.bf16 %v1783, %v1782
      %v1878 = vpack.c.bf16 %v1785, %v1784
      %v1879 = vpack.c.bf16 %v1787, %v1786
      %v1880 = vpack.c.bf16 %v1789, %v1788
      %v1881 = vpack.c.bf16 %v1791, %v1790
      %v1882 = vpack.c.bf16 %v1793, %v1792
      %v1883 = vpack.c.bf16 %v1795, %v1794
      %v1884 = vpack.c.bf16 %v1797, %v1796
      %v1885 = vpack.c.bf16 %v1799, %v1798
      %v1886 = vpack.c.bf16 %v1801, %v1800
      %v1887 = vpack.c.bf16 %v1803, %v1802
      %v1888 = vpack.c.bf16 %v1805, %v1804
      %v1889 = vpack.c.bf16 %v1807, %v1806
      %v1890 = vpack.c.bf16 %v1809, %v1808
      %v1891 = vpack.c.bf16 %v1811, %v1810
      %v1892 = vpack.c.bf16 %v1813, %v1812
      %v1893 = vpack.c.bf16 %v1815, %v1814
      %v1894 = vpack.c.bf16 %v1817, %v1816
      %v1895 = vpack.c.bf16 %v1819, %v1818
      %v1896 = vpack.c.bf16 %v1821, %v1820
      %v1897 = vpack.c.bf16 %v1823, %v1822
      %v1898 = vpack.c.bf16 %v1825, %v1824
      %v1899 = vpack.c.bf16 %v1827, %v1826
      %v1900 = vpack.c.bf16 %v1829, %v1828
      %v1901 = vpack.c.bf16 %v1831, %v1830
      %v1902 = vpack.c.bf16 %v1833, %v1832
      %v1903 = vpack.c.bf16 %v1835, %v1834
      %v1904 = vpack.c.bf16 %v1837, %v1836
      %v1905 = vpack.c.bf16 %v1839, %v1838
      %v1906 = vpack.c.bf16 %v1841, %v1840
      %v1907 = vpack.c.bf16 %v1843, %v1842
      %v1972 = vunpack.c.l.b16 %v1844
      %v1973 = vunpack.c.h.b16 %v1844
      %v1974 = vunpack.c.l.b16 %v1845
      %v1975 = vunpack.c.h.b16 %v1845
      %v1976 = vunpack.c.l.b16 %v1846
      %v1977 = vunpack.c.h.b16 %v1846
      %v1978 = vunpack.c.l.b16 %v1847
      %v1979 = vunpack.c.h.b16 %v1847
      %v1980 = vunpack.c.l.b16 %v1848
      %v1981 = vunpack.c.h.b16 %v1848
      %v1982 = vunpack.c.l.b16 %v1849
      %v1983 = vunpack.c.h.b16 %v1849
      %v1984 = vunpack.c.l.b16 %v1850
      %v1985 = vunpack.c.h.b16 %v1850
      %v1986 = vunpack.c.l.b16 %v1851
      %v1987 = vunpack.c.h.b16 %v1851
      %v1988 = vunpack.c.l.b16 %v1852
      %v1989 = vunpack.c.h.b16 %v1852
      %v1990 = vunpack.c.l.b16 %v1853
      %v1991 = vunpack.c.h.b16 %v1853
      %v1992 = vunpack.c.l.b16 %v1854
      %v1993 = vunpack.c.h.b16 %v1854
      %v1994 = vunpack.c.l.b16 %v1855
      %v1995 = vunpack.c.h.b16 %v1855
      %v1996 = vunpack.c.l.b16 %v1856
      %v1997 = vunpack.c.h.b16 %v1856
      %v1998 = vunpack.c.l.b16 %v1857
      %v1999 = vunpack.c.h.b16 %v1857
      %v2000 = vunpack.c.l.b16 %v1858
      %v2001 = vunpack.c.h.b16 %v1858
      %v2002 = vunpack.c.l.b16 %v1859
      %v2003 = vunpack.c.h.b16 %v1859
      %v2004 = vunpack.c.l.b16 %v1860
      %v2005 = vunpack.c.h.b16 %v1860
      %v2006 = vunpack.c.l.b16 %v1861
      %v2007 = vunpack.c.h.b16 %v1861
      %v2008 = vunpack.c.l.b16 %v1862
      %v2009 = vunpack.c.h.b16 %v1862
      %v2010 = vunpack.c.l.b16 %v1863
      %v2011 = vunpack.c.h.b16 %v1863
      %v2012 = vunpack.c.l.b16 %v1864
      %v2013 = vunpack.c.h.b16 %v1864
      %v2014 = vunpack.c.l.b16 %v1865
      %v2015 = vunpack.c.h.b16 %v1865
      %v2016 = vunpack.c.l.b16 %v1866
      %v2017 = vunpack.c.h.b16 %v1866
      %v2018 = vunpack.c.l.b16 %v1867
      %v2019 = vunpack.c.h.b16 %v1867
      %v2020 = vunpack.c.l.b16 %v1868
      %v2021 = vunpack.c.h.b16 %v1868
      %v2022 = vunpack.c.l.b16 %v1869
      %v2023 = vunpack.c.h.b16 %v1869
      %v2024 = vunpack.c.l.b16 %v1870
      %v2025 = vunpack.c.h.b16 %v1870
      %v2026 = vunpack.c.l.b16 %v1871
      %v2027 = vunpack.c.h.b16 %v1871
      %v2028 = vunpack.c.l.b16 %v1872
      %v2029 = vunpack.c.h.b16 %v1872
      %v2030 = vunpack.c.l.b16 %v1873
      %v2031 = vunpack.c.h.b16 %v1873
      %v2032 = vunpack.c.l.b16 %v1874
      %v2033 = vunpack.c.h.b16 %v1874
      %v2034 = vunpack.c.l.b16 %v1875
      %v2035 = vunpack.c.h.b16 %v1875
      %v2036 = vunpack.c.l.b16 %v1876
      %v2037 = vunpack.c.h.b16 %v1876
      %v2038 = vunpack.c.l.b16 %v1877
      %v2039 = vunpack.c.h.b16 %v1877
      %v2040 = vunpack.c.l.b16 %v1878
      %v2041 = vunpack.c.h.b16 %v1878
      %v2042 = vunpack.c.l.b16 %v1879
      %v2043 = vunpack.c.h.b16 %v1879
      %v2044 = vunpack.c.l.b16 %v1880
      %v2045 = vunpack.c.h.b16 %v1880
      %v2046 = vunpack.c.l.b16 %v1881
      %v2047 = vunpack.c.h.b16 %v1881
      %v2048 = vunpack.c.l.b16 %v1882
      %v2049 = vunpack.c.h.b16 %v1882
      %v2050 = vunpack.c.l.b16 %v1883
      %v2051 = vunpack.c.h.b16 %v1883
      %v2052 = vunpack.c.l.b16 %v1884
      %v2053 = vunpack.c.h.b16 %v1884
      %v2054 = vunpack.c.l.b16 %v1885
      %v2055 = vunpack.c.h.b16 %v1885
      %v2056 = vunpack.c.l.b16 %v1886
      %v2057 = vunpack.c.h.b16 %v1886
      %v2058 = vunpack.c.l.b16 %v1887
      %v2059 = vunpack.c.h.b16 %v1887
      %v2060 = vunpack.c.l.b16 %v1888
      %v2061 = vunpack.c.h.b16 %v1888
      %v2062 = vunpack.c.l.b16 %v1889
      %v2063 = vunpack.c.h.b16 %v1889
      %v2064 = vunpack.c.l.b16 %v1890
      %v2065 = vunpack.c.h.b16 %v1890
      %v2066 = vunpack.c.l.b16 %v1891
      %v2067 = vunpack.c.h.b16 %v1891
      %v2068 = vunpack.c.l.b16 %v1892
      %v2069 = vunpack.c.h.b16 %v1892
      %v2070 = vunpack.c.l.b16 %v1893
      %v2071 = vunpack.c.h.b16 %v1893
      %v2072 = vunpack.c.l.b16 %v1894
      %v2073 = vunpack.c.h.b16 %v1894
      %v2074 = vunpack.c.l.b16 %v1895
      %v2075 = vunpack.c.h.b16 %v1895
      %v2076 = vunpack.c.l.b16 %v1896
      %v2077 = vunpack.c.h.b16 %v1896
      %v2078 = vunpack.c.l.b16 %v1897
      %v2079 = vunpack.c.h.b16 %v1897
      %v2080 = vunpack.c.l.b16 %v1898
      %v2081 = vunpack.c.h.b16 %v1898
      %v2082 = vunpack.c.l.b16 %v1899
      %v2083 = vunpack.c.h.b16 %v1899
      %v2084 = vunpack.c.l.b16 %v1900
      %v2085 = vunpack.c.h.b16 %v1900
      %v2086 = vunpack.c.l.b16 %v1901
      %v2087 = vunpack.c.h.b16 %v1901
      %v2088 = vunpack.c.l.b16 %v1902
      %v2089 = vunpack.c.h.b16 %v1902
      %v2090 = vunpack.c.l.b16 %v1903
      %v2091 = vunpack.c.h.b16 %v1903
      %v2092 = vunpack.c.l.b16 %v1904
      %v2093 = vunpack.c.h.b16 %v1904
      %v2094 = vunpack.c.l.b16 %v1905
      %v2095 = vunpack.c.h.b16 %v1905
      %v2096 = vunpack.c.l.b16 %v1906
      %v2097 = vunpack.c.h.b16 %v1906
      %v2098 = vunpack.c.l.b16 %v1907
      %v2099 = vunpack.c.h.b16 %v1907
      %v2100 = vpack.c.b16 %v1972, %v1972
      %v2101 = vpack.c.b16 %v1973, %v1973
      %v2102 = vpack.c.b16 %v1974, %v1974
      %v2103 = vpack.c.b16 %v1975, %v1975
      %v2104 = vpack.c.b16 %v1976, %v1976
      %v2105 = vpack.c.b16 %v1977, %v1977
      %v2106 = vpack.c.b16 %v1978, %v1978
      %v2107 = vpack.c.b16 %v1979, %v1979
      %v2108 = vpack.c.b16 %v1980, %v1980
      %v2109 = vpack.c.b16 %v1981, %v1981
      %v2110 = vpack.c.b16 %v1982, %v1982
      %v2111 = vpack.c.b16 %v1983, %v1983
      %v2112 = vpack.c.b16 %v1984, %v1984
      %v2113 = vpack.c.b16 %v1985, %v1985
      %v2114 = vpack.c.b16 %v1986, %v1986
      %v2115 = vpack.c.b16 %v1987, %v1987
      %v2116 = vpack.c.b16 %v1988, %v1988
      %v2117 = vpack.c.b16 %v1989, %v1989
      %v2118 = vpack.c.b16 %v1990, %v1990
      %v2119 = vpack.c.b16 %v1991, %v1991
      %v2120 = vpack.c.b16 %v1992, %v1992
      %v2121 = vpack.c.b16 %v1993, %v1993
      %v2122 = vpack.c.b16 %v1994, %v1994
      %v2123 = vpack.c.b16 %v1995, %v1995
      %v2124 = vpack.c.b16 %v1996, %v1996
      %v2125 = vpack.c.b16 %v1997, %v1997
      %v2126 = vpack.c.b16 %v1998, %v1998
      %v2127 = vpack.c.b16 %v1999, %v1999
      %v2128 = vpack.c.b16 %v2000, %v2000
      %v2129 = vpack.c.b16 %v2001, %v2001
      %v2130 = vpack.c.b16 %v2002, %v2002
      %v2131 = vpack.c.b16 %v2003, %v2003
      %v2132 = vpack.c.b16 %v2004, %v2004
      %v2133 = vpack.c.b16 %v2005, %v2005
      %v2134 = vpack.c.b16 %v2006, %v2006
      %v2135 = vpack.c.b16 %v2007, %v2007
      %v2136 = vpack.c.b16 %v2008, %v2008
      %v2137 = vpack.c.b16 %v2009, %v2009
      %v2138 = vpack.c.b16 %v2010, %v2010
      %v2139 = vpack.c.b16 %v2011, %v2011
      %v2140 = vpack.c.b16 %v2012, %v2012
      %v2141 = vpack.c.b16 %v2013, %v2013
      %v2142 = vpack.c.b16 %v2014, %v2014
      %v2143 = vpack.c.b16 %v2015, %v2015
      %v2144 = vpack.c.b16 %v2016, %v2016
      %v2145 = vpack.c.b16 %v2017, %v2017
      %v2146 = vpack.c.b16 %v2018, %v2018
      %v2147 = vpack.c.b16 %v2019, %v2019
      %v2148 = vpack.c.b16 %v2020, %v2020
      %v2149 = vpack.c.b16 %v2021, %v2021
      %v2150 = vpack.c.b16 %v2022, %v2022
      %v2151 = vpack.c.b16 %v2023, %v2023
      %v2152 = vpack.c.b16 %v2024, %v2024
      %v2153 = vpack.c.b16 %v2025, %v2025
      %v2154 = vpack.c.b16 %v2026, %v2026
      %v2155 = vpack.c.b16 %v2027, %v2027
      %v2156 = vpack.c.b16 %v2028, %v2028
      %v2157 = vpack.c.b16 %v2029, %v2029
      %v2158 = vpack.c.b16 %v2030, %v2030
      %v2159 = vpack.c.b16 %v2031, %v2031
      %v2160 = vpack.c.b16 %v2032, %v2032
      %v2161 = vpack.c.b16 %v2033, %v2033
      %v2162 = vpack.c.b16 %v2034, %v2034
      %v2163 = vpack.c.b16 %v2035, %v2035
      %v2164 = vpack.c.b16 %v2036, %v2036
      %v2165 = vpack.c.b16 %v2037, %v2037
      %v2166 = vpack.c.b16 %v2038, %v2038
      %v2167 = vpack.c.b16 %v2039, %v2039
      %v2168 = vpack.c.b16 %v2040, %v2040
      %v2169 = vpack.c.b16 %v2041, %v2041
      %v2170 = vpack.c.b16 %v2042, %v2042
      %v2171 = vpack.c.b16 %v2043, %v2043
      %v2172 = vpack.c.b16 %v2044, %v2044
      %v2173 = vpack.c.b16 %v2045, %v2045
      %v2174 = vpack.c.b16 %v2046, %v2046
      %v2175 = vpack.c.b16 %v2047, %v2047
      %v2176 = vpack.c.b16 %v2048, %v2048
      %v2177 = vpack.c.b16 %v2049, %v2049
      %v2178 = vpack.c.b16 %v2050, %v2050
      %v2179 = vpack.c.b16 %v2051, %v2051
      %v2180 = vpack.c.b16 %v2052, %v2052
      %v2181 = vpack.c.b16 %v2053, %v2053
      %v2182 = vpack.c.b16 %v2054, %v2054
      %v2183 = vpack.c.b16 %v2055, %v2055
      %v2184 = vpack.c.b16 %v2056, %v2056
      %v2185 = vpack.c.b16 %v2057, %v2057
      %v2186 = vpack.c.b16 %v2058, %v2058
      %v2187 = vpack.c.b16 %v2059, %v2059
      %v2188 = vpack.c.b16 %v2060, %v2060
      %v2189 = vpack.c.b16 %v2061, %v2061
      %v2190 = vpack.c.b16 %v2062, %v2062
      %v2191 = vpack.c.b16 %v2063, %v2063
      %v2192 = vpack.c.b16 %v2064, %v2064
      %v2193 = vpack.c.b16 %v2065, %v2065
      %v2194 = vpack.c.b16 %v2066, %v2066
      %v2195 = vpack.c.b16 %v2067, %v2067
      %v2196 = vpack.c.b16 %v2068, %v2068
      %v2197 = vpack.c.b16 %v2069, %v2069
      %v2198 = vpack.c.b16 %v2070, %v2070
      %v2199 = vpack.c.b16 %v2071, %v2071
      %v2200 = vpack.c.b16 %v2072, %v2072
      %v2201 = vpack.c.b16 %v2073, %v2073
      %v2202 = vpack.c.b16 %v2074, %v2074
      %v2203 = vpack.c.b16 %v2075, %v2075
      %v2204 = vpack.c.b16 %v2076, %v2076
      %v2205 = vpack.c.b16 %v2077, %v2077
      %v2206 = vpack.c.b16 %v2078, %v2078
      %v2207 = vpack.c.b16 %v2079, %v2079
      %v2208 = vpack.c.b16 %v2080, %v2080
      %v2209 = vpack.c.b16 %v2081, %v2081
      %v2210 = vpack.c.b16 %v2082, %v2082
      %v2211 = vpack.c.b16 %v2083, %v2083
      %v2212 = vpack.c.b16 %v2084, %v2084
      %v2213 = vpack.c.b16 %v2085, %v2085
      %v2214 = vpack.c.b16 %v2086, %v2086
      %v2215 = vpack.c.b16 %v2087, %v2087
      %v2216 = vpack.c.b16 %v2088, %v2088
      %v2217 = vpack.c.b16 %v2089, %v2089
      %v2218 = vpack.c.b16 %v2090, %v2090
      %v2219 = vpack.c.b16 %v2091, %v2091
      %v2220 = vpack.c.b16 %v2092, %v2092
      %v2221 = vpack.c.b16 %v2093, %v2093
      %v2222 = vpack.c.b16 %v2094, %v2094
      %v2223 = vpack.c.b16 %v2095, %v2095
      %v2224 = vpack.c.b16 %v2096, %v2096
      %v2225 = vpack.c.b16 %v2097, %v2097
      %v2226 = vpack.c.b16 %v2098, %v2098
      %v2227 = vpack.c.b16 %v2099, %v2099
      %2356 = vst [vmem:[%s265] sm:$0xf] %v2100
      %2357 = vst [vmem:[%s265 + $0x4] sm:$0xf] %v2101
      %2358 = vst [vmem:[%s265 + $0x8] sm:$0xf] %v2102
      %2359 = vst [vmem:[%s265 + $0xc] sm:$0xf] %v2103
      %2360 = vst [vmem:[%s265 + $0x10] sm:$0xf] %v2104
      %2361 = vst [vmem:[%s265 + $0x14] sm:$0xf] %v2105
      %2362 = vst [vmem:[%s265 + $0x18] sm:$0xf] %v2106
      %2363 = vst [vmem:[%s265 + $0x1c] sm:$0xf] %v2107
      %2364 = vst [vmem:[%s265 + $0x20] sm:$0xf] %v2108
      %2365 = vst [vmem:[%s265 + $0x24] sm:$0xf] %v2109
      %2366 = vst [vmem:[%s265 + $0x28] sm:$0xf] %v2110
      %2367 = vst [vmem:[%s265 + $0x2c] sm:$0xf] %v2111
      %2368 = vst [vmem:[%s265 + $0x30] sm:$0xf] %v2112
      %2369 = vst [vmem:[%s265 + $0x34] sm:$0xf] %v2113
      %2370 = vst [vmem:[%s265 + $0x38] sm:$0xf] %v2114
      %2371 = vst [vmem:[%s265 + $0x3c] sm:$0xf] %v2115
      %2372 = vst [vmem:[%s265 + $0x40] sm:$0xf] %v2116
      %2373 = vst [vmem:[%s265 + $0x44] sm:$0xf] %v2117
      %2374 = vst [vmem:[%s265 + $0x48] sm:$0xf] %v2118
      %2375 = vst [vmem:[%s265 + $0x4c] sm:$0xf] %v2119
      %2376 = vst [vmem:[%s265 + $0x50] sm:$0xf] %v2120
      %2377 = vst [vmem:[%s265 + $0x54] sm:$0xf] %v2121
      %2378 = vst [vmem:[%s265 + $0x58] sm:$0xf] %v2122
      %2379 = vst [vmem:[%s265 + $0x5c] sm:$0xf] %v2123
      %2380 = vst [vmem:[%s265 + $0x60] sm:$0xf] %v2124
      %2381 = vst [vmem:[%s265 + $0x64] sm:$0xf] %v2125
      %2382 = vst [vmem:[%s265 + $0x68] sm:$0xf] %v2126
      %2383 = vst [vmem:[%s265 + $0x6c] sm:$0xf] %v2127
      %2384 = vst [vmem:[%s265 + $0x70] sm:$0xf] %v2128
      %2385 = vst [vmem:[%s265 + $0x74] sm:$0xf] %v2129
      %2386 = vst [vmem:[%s265 + $0x78] sm:$0xf] %v2130
      %2387 = vst [vmem:[%s265 + $0x7c] sm:$0xf] %v2131
      %2388 = vst [vmem:[%s265 + $0x80] sm:$0xf] %v2132
      %2389 = vst [vmem:[%s265 + $0x84] sm:$0xf] %v2133
      %2390 = vst [vmem:[%s265 + $0x88] sm:$0xf] %v2134
      %2391 = vst [vmem:[%s265 + $0x8c] sm:$0xf] %v2135
      %2392 = vst [vmem:[%s265 + $0x90] sm:$0xf] %v2136
      %2393 = vst [vmem:[%s265 + $0x94] sm:$0xf] %v2137
      %2394 = vst [vmem:[%s265 + $0x98] sm:$0xf] %v2138
      %2395 = vst [vmem:[%s265 + $0x9c] sm:$0xf] %v2139
      %2396 = vst [vmem:[%s265 + $0xa0] sm:$0xf] %v2140
      %2397 = vst [vmem:[%s265 + $0xa4] sm:$0xf] %v2141
      %2398 = vst [vmem:[%s265 + $0xa8] sm:$0xf] %v2142
      %2399 = vst [vmem:[%s265 + $0xac] sm:$0xf] %v2143
      %2400 = vst [vmem:[%s265 + $0xb0] sm:$0xf] %v2144
      %2401 = vst [vmem:[%s265 + $0xb4] sm:$0xf] %v2145
      %2402 = vst [vmem:[%s265 + $0xb8] sm:$0xf] %v2146
      %2403 = vst [vmem:[%s265 + $0xbc] sm:$0xf] %v2147
      %2404 = vst [vmem:[%s265 + $0xc0] sm:$0xf] %v2148
      %2405 = vst [vmem:[%s265 + $0xc4] sm:$0xf] %v2149
      %2406 = vst [vmem:[%s265 + $0xc8] sm:$0xf] %v2150
      %2407 = vst [vmem:[%s265 + $0xcc] sm:$0xf] %v2151
      %2408 = vst [vmem:[%s265 + $0xd0] sm:$0xf] %v2152
      %2409 = vst [vmem:[%s265 + $0xd4] sm:$0xf] %v2153
      %2410 = vst [vmem:[%s265 + $0xd8] sm:$0xf] %v2154
      %2411 = vst [vmem:[%s265 + $0xdc] sm:$0xf] %v2155
      %2412 = vst [vmem:[%s265 + $0xe0] sm:$0xf] %v2156
      %2413 = vst [vmem:[%s265 + $0xe4] sm:$0xf] %v2157
      %2414 = vst [vmem:[%s265 + $0xe8] sm:$0xf] %v2158
      %2415 = vst [vmem:[%s265 + $0xec] sm:$0xf] %v2159
      %2416 = vst [vmem:[%s265 + $0xf0] sm:$0xf] %v2160
      %2417 = vst [vmem:[%s265 + $0xf4] sm:$0xf] %v2161
      %2418 = vst [vmem:[%s265 + $0xf8] sm:$0xf] %v2162
      %2419 = vst [vmem:[%s265 + $0xfc] sm:$0xf] %v2163
      %2420 = vst [vmem:[%s265 + $0x100] sm:$0xf] %v2164
      %2421 = vst [vmem:[%s265 + $0x104] sm:$0xf] %v2165
      %2422 = vst [vmem:[%s265 + $0x108] sm:$0xf] %v2166
      %2423 = vst [vmem:[%s265 + $0x10c] sm:$0xf] %v2167
      %2424 = vst [vmem:[%s265 + $0x110] sm:$0xf] %v2168
      %2425 = vst [vmem:[%s265 + $0x114] sm:$0xf] %v2169
      %2426 = vst [vmem:[%s265 + $0x118] sm:$0xf] %v2170
      %2427 = vst [vmem:[%s265 + $0x11c] sm:$0xf] %v2171
      %2428 = vst [vmem:[%s265 + $0x120] sm:$0xf] %v2172
      %2429 = vst [vmem:[%s265 + $0x124] sm:$0xf] %v2173
      %2430 = vst [vmem:[%s265 + $0x128] sm:$0xf] %v2174
      %2431 = vst [vmem:[%s265 + $0x12c] sm:$0xf] %v2175
      %2432 = vst [vmem:[%s265 + $0x130] sm:$0xf] %v2176
      %2433 = vst [vmem:[%s265 + $0x134] sm:$0xf] %v2177
      %2434 = vst [vmem:[%s265 + $0x138] sm:$0xf] %v2178
      %2435 = vst [vmem:[%s265 + $0x13c] sm:$0xf] %v2179
      %2436 = vst [vmem:[%s265 + $0x140] sm:$0xf] %v2180
      %2437 = vst [vmem:[%s265 + $0x144] sm:$0xf] %v2181
      %2438 = vst [vmem:[%s265 + $0x148] sm:$0xf] %v2182
      %2439 = vst [vmem:[%s265 + $0x14c] sm:$0xf] %v2183
      %2440 = vst [vmem:[%s265 + $0x150] sm:$0xf] %v2184
      %2441 = vst [vmem:[%s265 + $0x154] sm:$0xf] %v2185
      %2442 = vst [vmem:[%s265 + $0x158] sm:$0xf] %v2186
      %2443 = vst [vmem:[%s265 + $0x15c] sm:$0xf] %v2187
      %2444 = vst [vmem:[%s265 + $0x160] sm:$0xf] %v2188
      %2445 = vst [vmem:[%s265 + $0x164] sm:$0xf] %v2189
      %2446 = vst [vmem:[%s265 + $0x168] sm:$0xf] %v2190
      %2447 = vst [vmem:[%s265 + $0x16c] sm:$0xf] %v2191
      %2448 = vst [vmem:[%s265 + $0x170] sm:$0xf] %v2192
      %2449 = vst [vmem:[%s265 + $0x174] sm:$0xf] %v2193
      %2450 = vst [vmem:[%s265 + $0x178] sm:$0xf] %v2194
      %2451 = vst [vmem:[%s265 + $0x17c] sm:$0xf] %v2195
      %2452 = vst [vmem:[%s265 + $0x180] sm:$0xf] %v2196
      %2453 = vst [vmem:[%s265 + $0x184] sm:$0xf] %v2197
      %2454 = vst [vmem:[%s265 + $0x188] sm:$0xf] %v2198
      %2455 = vst [vmem:[%s265 + $0x18c] sm:$0xf] %v2199
      %2456 = vst [vmem:[%s265 + $0x190] sm:$0xf] %v2200
      %2457 = vst [vmem:[%s265 + $0x194] sm:$0xf] %v2201
      %2458 = vst [vmem:[%s265 + $0x198] sm:$0xf] %v2202
      %2459 = vst [vmem:[%s265 + $0x19c] sm:$0xf] %v2203
      %2460 = vst [vmem:[%s265 + $0x1a0] sm:$0xf] %v2204
      %2461 = vst [vmem:[%s265 + $0x1a4] sm:$0xf] %v2205
      %2462 = vst [vmem:[%s265 + $0x1a8] sm:$0xf] %v2206
      %2463 = vst [vmem:[%s265 + $0x1ac] sm:$0xf] %v2207
      %2464 = vst [vmem:[%s265 + $0x1b0] sm:$0xf] %v2208
      %2465 = vst [vmem:[%s265 + $0x1b4] sm:$0xf] %v2209
      %2466 = vst [vmem:[%s265 + $0x1b8] sm:$0xf] %v2210
      %2467 = vst [vmem:[%s265 + $0x1bc] sm:$0xf] %v2211
      %2468 = vst [vmem:[%s265 + $0x1c0] sm:$0xf] %v2212
      %2469 = vst [vmem:[%s265 + $0x1c4] sm:$0xf] %v2213
      %2470 = vst [vmem:[%s265 + $0x1c8] sm:$0xf] %v2214
      %2471 = vst [vmem:[%s265 + $0x1cc] sm:$0xf] %v2215
      %2472 = vst [vmem:[%s265 + $0x1d0] sm:$0xf] %v2216
      %2473 = vst [vmem:[%s265 + $0x1d4] sm:$0xf] %v2217
      %2474 = vst [vmem:[%s265 + $0x1d8] sm:$0xf] %v2218
      %2475 = vst [vmem:[%s265 + $0x1dc] sm:$0xf] %v2219
      %2476 = vst [vmem:[%s265 + $0x1e0] sm:$0xf] %v2220
      %2477 = vst [vmem:[%s265 + $0x1e4] sm:$0xf] %v2221
      %2478 = vst [vmem:[%s265 + $0x1e8] sm:$0xf] %v2222
      %2479 = vst [vmem:[%s265 + $0x1ec] sm:$0xf] %v2223
      %2480 = vst [vmem:[%s265 + $0x1f0] sm:$0xf] %v2224
      %2481 = vst [vmem:[%s265 + $0x1f4] sm:$0xf] %v2225
      %2482 = vst [vmem:[%s265 + $0x1f8] sm:$0xf] %v2226
      %2483 = vst [vmem:[%s265 + $0x1fc] sm:$0xf] %v2227
      %s2484 = smul.u32 128, %s19
      %p2485 = scmp.lt.s32.totalorder %s2484, 255
      %s2486 = scalar_select %p2485, %s2484, 255
      %p2487 = scmp.lt.s32.totalorder %s20, 0
      %s2488 = scalar_select %p2487, %s20, 0
      %s2489 = sadd.s32 %s2488, %s2486
      %s2490 = smul.addr %s2489, 4
      %s2491 = scalar_lea.vmem %s3, %s2490
      // Predicated region
      $region33: #{stem.1} parent=31 // pred_check
        %p2492 = pneg %p135
      $region34: #{stem.1} parent=31 // pred_check_branch
        %2494 = sbr.rel (%p2492) target = $region36
      $region35: #{stem.1} parent=31 // pred_region
        %s2495 = smul.u32 128, %s19
      $region36: #{stem.1} parent=31 // pred_fallthru
        _
    $region32: #{stem.1} parent=5 // pred_fallthru
      _
    %p2496 = scmp.le.s32.totalorder 2, %s9
    // Predicated region
    $region37: #{stem.1} parent=5 // pred_check
      %p2497 = pneg %p2496
    $region38: #{stem.1} parent=5 // pred_check_branch
      %2499 = sbr.rel (%p2497) target = $region40
    $region39: #{stem.1} parent=5 // pred_region
      %s2500 = ssub.s32 %s9, 2
      // Predicated region
      $region41: #{stem.1} parent=39 // pred_check
        %p2501 = pneg %p141
      $region42: #{stem.1} parent=39 // pred_check_branch
        %2503 = sbr.rel (%p2501) target = $region44
      $region43: #{stem.1} parent=39 // pred_region
        %s2504 = smul.u32 128, %s22
        %p2505 = scmp.lt.s32.totalorder %s2504, 255
        %s2506 = scalar_select %p2505, %s2504, 255
        %p2507 = scmp.lt.s32.totalorder %s23, 0
        %s2508 = scalar_select %p2507, %s23, 0
        %s2509 = sadd.s32 %s2508, %s2506
        %s2510 = smul.addr %s2509, 4
        %s2511 = scalar_lea.vmem %s3, %s2510
      $region44: #{stem.1} parent=39 // pred_fallthru
        _
    $region40: #{stem.1} parent=5 // pred_fallthru
      _
  $region6: #{stem.1} parent=0 // loop_footer
    %s13 = sadd.s32 1, %s9
  $region7: #{stem.1} parent=0 // loop_footer_branch
    %8 = sbr.rel target = $region3
  $region8: #{stem.1} parent=0 // loop_exit
    _

</llo_original>
